<compile_context>
chip_gen: v5e
topology: v5e:2x2
jax: 0.10.0
libtpu: 0.0.40
codegen_flags: <defaults>
</compile_context>

<pallas_src>
import math
import functools

import numpy as np
import jax
import jax.numpy as jnp
from jax.experimental import pallas as pl
from jax.experimental.pallas import tpu as pltpu


# ----------------------------------------------------------------------------
# shared math helpers (used identically inside the kernel and in the reference)
# ----------------------------------------------------------------------------
def _erf(x):
    # Abramowitz & Stegun 7.1.26 rational approximation of erf
    # (max abs error ~1.5e-7).  Avoids relying on lax.erf lowering in Mosaic.
    p = 0.3275911
    a1, a2, a3, a4, a5 = (0.254829592, -0.284496736, 1.421413741,
                          -1.453152027, 1.061405429)
    s = jnp.where(x >= 0.0, 1.0, -1.0)
    z = jnp.abs(x)
    t = 1.0 / (1.0 + p * z)
    poly = ((((a5 * t + a4) * t + a3) * t + a2) * t + a1) * t
    return s * (1.0 - poly * jnp.exp(-z * z))


def _gelu_exact(x):
    # nn.GELU() default (approximate='none'): 0.5*x*(1+erf(x/sqrt(2)))
    return 0.5 * x * (1.0 + _erf(x * (1.0 / math.sqrt(2.0))))


def _layernorm(x, gamma, beta, eps=1e-5):
    mean = jnp.mean(x, axis=-1, keepdims=True)
    var = jnp.mean((x - mean) ** 2, axis=-1, keepdims=True)
    return (x - mean) * jax.lax.rsqrt(var + eps) * gamma + beta


# ----------------------------------------------------------------------------
# Pallas kernel: single invocation, everything 2-D (B*L, ...)
# ----------------------------------------------------------------------------
def mlstm_kernel(B, L, D, K, H, x_ref, state_ref, wbig_ref, small_ref, out_ref):
    f32 = jnp.float32
    hd = D // H
    BL = B * L

    x = x_ref[...]           # (BL, D)
    state = state_ref[...]   # (BL, D)
    small = small_ref[...]   # (3D+16, D) packed small parameters

    # ---- unpack the small parameter slab (static slices) -------------------
    wproj = small[0:D, :]            # (D, D)   attention output projection
    wmg = small[D:3 * D, :]          # (2D, D)  memory gate weight
    v0 = 3 * D
    bproj = small[v0 + 0:v0 + 1, :]
    gi_s, gi_b = small[v0 + 1:v0 + 2, :], small[v0 + 2:v0 + 3, :]
    gf_s, gf_b = small[v0 + 3:v0 + 4, :], small[v0 + 4:v0 + 5, :]
    go_s, go_b = small[v0 + 5:v0 + 6, :], small[v0 + 6:v0 + 7, :]
    bmg = small[v0 + 7:v0 + 8, :]
    ln1g, ln1b = small[v0 + 8:v0 + 9, :], small[v0 + 9:v0 + 10, :]
    ln2g, ln2b = small[v0 + 10:v0 + 11, :], small[v0 + 11:v0 + 12, :]
    bq = small[v0 + 12:v0 + 13, :]
    bk = small[v0 + 13:v0 + 14, :]
    bv = small[v0 + 14:v0 + 15, :]
    bconv = small[v0 + 15:v0 + 16, :]

    # ---- build the K causal taps in-kernel --------------------------------
    # tap j = x delayed by j steps within each batch row.  Built with tiny
    # iota-derived shift matrices (batch-boundary aware), then lane-concatenated
    # into xbig (BL, K*D) feeding the single fused GEMM.
    r_idx = jax.lax.broadcasted_iota(jnp.int32, (BL, BL), 0)
    c_idx = jax.lax.broadcasted_iota(jnp.int32, (BL, BL), 1)
    if (L & (L - 1)) == 0:
        r_mod = jnp.bitwise_and(r_idx, L - 1)       # row position within a batch
    else:
        r_mod = jax.lax.rem(r_idx, L)
    taps = [x]
    for j in range(1, K):
        shift = jnp.where((c_idx == r_idx - j) & (r_mod >= j),
                          1.0, 0.0).astype(f32)     # (BL, BL) shift matrix
        taps.append(jnp.dot(shift, x, preferred_element_type=f32))
    xbig = jnp.concatenate(taps, axis=-1)           # (BL, K*D)

    # ---- one fused GEMM: [ q | k | v | matrix-memory | causal conv ] -------
    big = jnp.dot(xbig, wbig_ref[...], preferred_element_type=f32)
    qf = big[:, 0 * D:1 * D] + bq                   # (BL, D)
    kf = big[:, 1 * D:2 * D] + bk
    vf = big[:, 2 * D:3 * D] + bv
    mem = big[:, 3 * D:4 * D]                       # block-diag matrix memory
    conv = _gelu_exact(big[:, 4 * D:5 * D] + bconv)  # causal Conv1d + GELU

    # ---- multi-head attention: all (batch, head) tiles, one softmax pass ---
    scale = hd ** (-0.5)
    s_list = []
    for b in range(B):
        r0, r1 = b * L, (b + 1) * L
        for h in range(H):
            c0, c1 = h * hd, (h + 1) * hd
            s_list.append(jnp.einsum('ld,md->lm', qf[r0:r1, c0:c1],
                                     kf[r0:r1, c0:c1],
                                     preferred_element_type=f32) * scale)
    s_all = jnp.concatenate(s_list, axis=0)         # (B*H*L, L)
    s_all = s_all - jnp.max(s_all, axis=-1, keepdims=True)
    p_all = jnp.exp(s_all)
    p_all = p_all * pl.reciprocal(jnp.sum(p_all, axis=-1, keepdims=True),
                                  approx=False)

    att_rows = []
    for b in range(B):
        r0, r1 = b * L, (b + 1) * L
        heads = []
        for h in range(H):
            blk = (b * H + h) * L
            heads.append(jnp.dot(p_all[blk:blk + L, :],
                                 vf[r0:r1, h * hd:(h + 1) * hd],
                                 preferred_element_type=f32))
        att_rows.append(jnp.concatenate(heads, axis=-1))   # (L, D)
    att = jnp.concatenate(att_rows, axis=0)                # (BL, D)

    attn = jnp.dot(att, wproj, preferred_element_type=f32) + bproj

    combined = _layernorm(attn + conv + mem, ln1g, ln1b)
    # TODO(synk): nn.Dropout layers are treated as identity (eval/inference mode).

    # ---- exponential gates + memory gate (single 2D-deep GEMM) -------------
    i_g = jnp.exp(gi_s * combined + gi_b)
    f_g = jnp.exp(gf_s * state + gf_b)
    o_g = jnp.exp(go_s * combined + go_b)

    m = jnp.tanh(jnp.dot(jnp.concatenate([combined, state], axis=-1),
                         wmg, preferred_element_type=f32) + bmg)

    new_state = f_g * state + i_g * m
    out = _layernorm(o_g * jnp.tanh(new_state) + x, ln2g, ln2b)

    # single lane-concatenated output slab [ out | new_state ]
    out_ref[...] = jnp.concatenate([out, new_state], axis=-1)


# ----------------------------------------------------------------------------
# one-time host-side parameter repacking (hoisted out of the forward path)
# ----------------------------------------------------------------------------
def pack_mlstm_params(params, *, dim, kernel_size):
    D, K = dim, kernel_size
    f32 = jnp.float32

    wqkv = params['qkv_w'].T.astype(f32)                       # (D, 3D)

    # block-diagonal matrix-memory weight with per-block scale folded in
    nb = params['mm_mem'].shape[0]
    blocks = [params['mm_mem'][i] * params['mm_scale'][i] for i in range(nb)]
    wmm = jax.scipy.linalg.block_diag(*blocks).astype(f32)     # (D, D)

    # Conv1d weight (Dout, Din, K): tap j multiplies x delayed by j steps
    wc = params['conv_w']
    wconv = [wc[:, :, K - 1 - j].T.astype(f32) for j in range(K)]  # (Din, Dout)

    # fused weight (K*D, 5D): [ q | k | v (3D) | mem (D) | conv (D) ]
    wbig = jnp.zeros((K * D, 5 * D), f32)
    wbig = wbig.at[:D, :3 * D].set(wqkv)
    wbig = wbig.at[:D, 3 * D:4 * D].set(wmm)
    for j in range(K):
        wbig = wbig.at[j * D:(j + 1) * D, 4 * D:5 * D].set(wconv[j])

    # invariant: delayed taps (rows D:K*D) must only feed the conv columns
    assert np.all(np.asarray(wbig)[D:, :4 * D] == 0.0), \
        "taps 1..K-1 must not contribute to qkv / matrix-memory columns"

    # all (1, D) per-channel vectors, (12, D)
    vecs = jnp.stack([
        params['proj_b'].reshape(D),
        params['gi_s'].reshape(D), params['gi_b'].reshape(D),
        params['gf_s'].reshape(D), params['gf_b'].reshape(D),
        params['go_s'].reshape(D), params['go_b'].reshape(D),
        params['mg_b'].reshape(D),
        params['ln1_g'].reshape(D), params['ln1_b'].reshape(D),
        params['ln2_g'].reshape(D), params['ln2_b'].reshape(D),
    ], axis=0).astype(f32)

    # one packed slab for every small parameter -> a single input DMA
    small = jnp.concatenate([
        params['proj_w'].T.astype(f32),              # rows [0, D)     attn out-proj
        params['mg_w'].T.astype(f32),                # rows [D, 3D)    memory gate
        vecs,                                        # rows [3D, 3D+12)
        params['qkv_b'].astype(f32).reshape(3, D),   # rows 3D+12..14: bq, bk, bv
        params['conv_b'].astype(f32).reshape(1, D),  # row  3D+15:     conv bias
    ], axis=0)                                       # (3D+16, D)

    return {'wbig': wbig, 'small': small}


# ----------------------------------------------------------------------------
# forward wrapper: minimal plumbing + a single pallas_call (grid=(1,))
# ----------------------------------------------------------------------------
@functools.partial(jax.jit, static_argnames=("kernel_size", "num_heads"))
def mlstm_layer_forward(x, state, packed, *, kernel_size, num_heads):
    B, L, D = x.shape
    K = kernel_size
    f32 = jnp.float32
    BL = B * L

    x2 = x.reshape(BL, D).astype(f32)
    s2 = state.reshape(BL, D).astype(f32)

    kernel = functools.partial(mlstm_kernel, B, L, D, K, num_heads)
    fused = pl.pallas_call(
        kernel,
        grid=(1,),
        in_specs=[
            pl.BlockSpec((BL, D), lambda i: (0, 0)),             # x
            pl.BlockSpec((BL, D), lambda i: (0, 0)),             # state
            pl.BlockSpec((K * D, 5 * D), lambda i: (0, 0)),      # fused weight
            pl.BlockSpec((3 * D + 16, D), lambda i: (0, 0)),     # packed small params
        ],
        out_specs=pl.BlockSpec((BL, 2 * D), lambda i: (0, 0)),   # [out | new_state]
        out_shape=jax.ShapeDtypeStruct((BL, 2 * D), f32),
        compiler_params=pltpu.CompilerParams(
            dimension_semantics=("arbitrary",)),
    )(x2, s2, packed['wbig'], packed['small'])

    out = fused[:, :D].reshape(B, L, D)
    new_state = fused[:, D:].reshape(B, L, D)
    return out, new_state


# ----------------------------------------------------------------------------
# pure-JAX reference (mirrors the PyTorch forward, eval mode)
# ----------------------------------------------------------------------------
def mlstm_layer_reference(x, state, params, *, kernel_size, num_heads):
    B, L, D = x.shape
    H, hd, K = num_heads, D // num_heads, kernel_size
    # attention
    qkv = x @ params['qkv_w'].T + params['qkv_b']
    qkv = qkv.reshape(B, L, 3, H, hd).transpose(2, 0, 3, 1, 4)
    q, k, v = qkv[0], qkv[1], qkv[2]
    attn = jnp.einsum('bhld,bhmd->bhlm', q, k) * hd ** (-0.5)
    attn = jax.nn.softmax(attn, axis=-1)
    att = jnp.einsum('bhlm,bhmd->bhld', attn, v).transpose(0, 2, 1, 3)
    att = att.reshape(B, L, D) @ params['proj_w'].T + params['proj_b']
    # causal conv + GELU
    xt = jnp.transpose(x, (0, 2, 1))
    xt = jnp.pad(xt, ((0, 0), (0, 0), (K - 1, K - 1)))
    conv = jax.lax.conv_general_dilated(xt, params['conv_w'], (1,), 'VALID',
                                        dimension_numbers=('NCH', 'OIH', 'NCH'))
    conv = conv + params['conv_b'][None, :, None]
    conv = _gelu_exact(conv[:, :, :L])
    conv = jnp.transpose(conv, (0, 2, 1))
    # matrix memory
    nb, bs, _ = params['mm_mem'].shape
    xb = x.reshape(B, L, nb, bs)
    mem = jnp.einsum('blmd,mde->blme', xb, params['mm_mem'])
    mem = (mem * params['mm_scale'][None, None, :, None]).reshape(B, L, D)

    combined = _layernorm(att + conv + mem, params['ln1_g'], params['ln1_b'])
    i = jnp.exp(params['gi_s'] * combined + params['gi_b'])
    f = jnp.exp(params['gf_s'] * state + params['gf_b'])
    o = jnp.exp(params['go_s'] * combined + params['go_b'])
    concat = jnp.concatenate([combined, state], axis=-1)
    m = jnp.tanh(concat @ params['mg_w'].T + params['mg_b'])
    new_state = f * state + i * m
    out = o * jnp.tanh(new_state)
    out = _layernorm(out + x, params['ln2_g'], params['ln2_b'])
    return out, new_state


# ----------------------------------------------------------------------------
if __name__ == "__main__":
    B, L, D = 2, 8, 32
    K, H, bs = 4, 4, 4          # conv1d_kernel_size, num_heads, qkv_proj_blocksize
    nb = D // bs

    key = jax.random.PRNGKey(0)
    ks = jax.random.split(key, 12)
    params = {
        'qkv_w': 0.1 * jax.random.normal(ks[0], (3 * D, D), jnp.float32),
        'qkv_b': 0.1 * jax.random.normal(ks[1], (3 * D,), jnp.float32),
        'proj_w': 0.1 * jax.random.normal(ks[2], (D, D), jnp.float32),
        'proj_b': 0.1 * jax.random.normal(ks[3], (D,), jnp.float32),
        'conv_w': 0.1 * jax.random.normal(ks[4], (D, D, K), jnp.float32),
        'conv_b': 0.1 * jax.random.normal(ks[5], (D,), jnp.float32),
        'mm_mem': jax.random.normal(ks[6], (nb, bs, bs), jnp.float32) / math.sqrt(bs),
        'mm_scale': jnp.ones((nb,), jnp.float32),
        'gi_s': jnp.ones((1, D), jnp.float32), 'gi_b': jnp.zeros((1, D), jnp.float32),
        'gf_s': jnp.ones((1, D), jnp.float32), 'gf_b': jnp.zeros((1, D), jnp.float32),
        'go_s': jnp.ones((1, D), jnp.float32), 'go_b': jnp.zeros((1, D), jnp.float32),
        'mg_w': 0.1 * jax.random.normal(ks[7], (D, 2 * D), jnp.float32),
        'mg_b': 0.1 * jax.random.normal(ks[8], (D,), jnp.float32),
        'ln1_g': jnp.ones((1, D), jnp.float32), 'ln1_b': jnp.zeros((1, D), jnp.float32),
        'ln2_g': jnp.ones((1, D), jnp.float32), 'ln2_b': jnp.zeros((1, D), jnp.float32),
    }

    x = jax.random.normal(ks[9], (B, L, D), jnp.float32)
    state = 0.1 * jax.random.normal(ks[10], (B, L, D), jnp.float32)

    # one-time parameter repacking (hoisted out of the forward path)
    packed = jax.tree_util.tree_map(jax.block_until_ready,
                                    pack_mlstm_params(params, dim=D, kernel_size=K))

    out, new_state = mlstm_layer_forward(x, state, packed,
                                         kernel_size=K, num_heads=H)
    jax.block_until_ready((out, new_state))

    out_ref, new_state_ref = mlstm_layer_reference(x, state, params,
                                                   kernel_size=K, num_heads=H)
    assert np.allclose(np.asarray(out), np.asarray(out_ref), atol=2e-3, rtol=2e-3)
    assert np.allclose(np.asarray(new_state), np.asarray(new_state_ref),
                       atol=2e-3, rtol=2e-3)
    print("KERNEL_OK")
</pallas_src>

<mosaic_0001>
module attributes {stable_mosaic.version = 11 : i64} {
  func.func @mlstm_kernel(%arg0: i32, %arg1: memref<16x32xf32, #tpu.memory_space<vmem>>, %arg2: memref<16x32xf32, #tpu.memory_space<vmem>>, %arg3: memref<128x160xf32, #tpu.memory_space<vmem>>, %arg4: memref<112x32xf32, #tpu.memory_space<vmem>>, %arg5: memref<16x64xf32, #tpu.memory_space<vmem>>) attributes {dimension_semantics = [#tpu.dimension_semantics<arbitrary>], iteration_bounds = array<i64: 1>, scalar_prefetch = 0 : i64, scratch_operands = 0 : i64, tpu.core_type = #tpu.core_type<tc>, window_params = [{pipeline_mode = #tpu.pipeline_mode<synchronous>, transform_indices = @transform_0, window_bounds = array<i64: 16, 32>}, {pipeline_mode = #tpu.pipeline_mode<synchronous>, transform_indices = @transform_1, window_bounds = array<i64: 16, 32>}, {pipeline_mode = #tpu.pipeline_mode<synchronous>, transform_indices = @transform_2, window_bounds = array<i64: 128, 160>}, {pipeline_mode = #tpu.pipeline_mode<synchronous>, transform_indices = @transform_3, window_bounds = array<i64: 112, 32>}, {pipeline_mode = #tpu.pipeline_mode<synchronous>, transform_indices = @transform_4, window_bounds = array<i64: 16, 64>}]} {
    %c0 = arith.constant 0 : index
    %c0_0 = arith.constant 0 : index
    %0 = vector.load %arg1[%c0, %c0_0] : memref<16x32xf32, #tpu.memory_space<vmem>>, vector<16x32xf32>
    %c0_1 = arith.constant 0 : index
    %c0_2 = arith.constant 0 : index
    %1 = vector.load %arg2[%c0_1, %c0_2] : memref<16x32xf32, #tpu.memory_space<vmem>>, vector<16x32xf32>
    %c0_3 = arith.constant 0 : index
    %c0_4 = arith.constant 0 : index
    %2 = vector.load %arg4[%c0_3, %c0_4] : memref<112x32xf32, #tpu.memory_space<vmem>>, vector<112x32xf32>
    %3 = vector.extract_strided_slice %2 {offsets = [0, 0], sizes = [32, 32], strides = [1, 1]} : vector<112x32xf32> to vector<32x32xf32>
    %4 = vector.extract_strided_slice %2 {offsets = [32, 0], sizes = [64, 32], strides = [1, 1]} : vector<112x32xf32> to vector<64x32xf32>
    %5 = vector.extract_strided_slice %2 {offsets = [96, 0], sizes = [1, 32], strides = [1, 1]} : vector<112x32xf32> to vector<1x32xf32>
    %6 = vector.extract_strided_slice %2 {offsets = [97, 0], sizes = [1, 32], strides = [1, 1]} : vector<112x32xf32> to vector<1x32xf32>
    %7 = vector.extract_strided_slice %2 {offsets = [98, 0], sizes = [1, 32], strides = [1, 1]} : vector<112x32xf32> to vector<1x32xf32>
    %8 = vector.extract_strided_slice %2 {offsets = [99, 0], sizes = [1, 32], strides = [1, 1]} : vector<112x32xf32> to vector<1x32xf32>
    %9 = vector.extract_strided_slice %2 {offsets = [100, 0], sizes = [1, 32], strides = [1, 1]} : vector<112x32xf32> to vector<1x32xf32>
    %10 = vector.extract_strided_slice %2 {offsets = [101, 0], sizes = [1, 32], strides = [1, 1]} : vector<112x32xf32> to vector<1x32xf32>
    %11 = vector.extract_strided_slice %2 {offsets = [102, 0], sizes = [1, 32], strides = [1, 1]} : vector<112x32xf32> to vector<1x32xf32>
    %12 = vector.extract_strided_slice %2 {offsets = [103, 0], sizes = [1, 32], strides = [1, 1]} : vector<112x32xf32> to vector<1x32xf32>
    %13 = vector.extract_strided_slice %2 {offsets = [104, 0], sizes = [1, 32], strides = [1, 1]} : vector<112x32xf32> to vector<1x32xf32>
    %14 = vector.extract_strided_slice %2 {offsets = [105, 0], sizes = [1, 32], strides = [1, 1]} : vector<112x32xf32> to vector<1x32xf32>
    %15 = vector.extract_strided_slice %2 {offsets = [106, 0], sizes = [1, 32], strides = [1, 1]} : vector<112x32xf32> to vector<1x32xf32>
    %16 = vector.extract_strided_slice %2 {offsets = [107, 0], sizes = [1, 32], strides = [1, 1]} : vector<112x32xf32> to vector<1x32xf32>
    %17 = vector.extract_strided_slice %2 {offsets = [108, 0], sizes = [1, 32], strides = [1, 1]} : vector<112x32xf32> to vector<1x32xf32>
    %18 = vector.extract_strided_slice %2 {offsets = [109, 0], sizes = [1, 32], strides = [1, 1]} : vector<112x32xf32> to vector<1x32xf32>
    %19 = vector.extract_strided_slice %2 {offsets = [110, 0], sizes = [1, 32], strides = [1, 1]} : vector<112x32xf32> to vector<1x32xf32>
    %20 = vector.extract_strided_slice %2 {offsets = [111, 0], sizes = [1, 32], strides = [1, 1]} : vector<112x32xf32> to vector<1x32xf32>
    %21 = tpu.iota {dimensions = array<i32: 0>} : vector<16x16xi32>
    %22 = tpu.iota {dimensions = array<i32: 1>} : vector<16x16xi32>
    %c7_i32 = arith.constant 7 : i32
    %23 = vector.broadcast %c7_i32 : i32 to vector<16x16xi32>
    %24 = arith.andi %21, %23 : vector<16x16xi32>
    %c1_i32 = arith.constant 1 : i32
    %25 = vector.broadcast %c1_i32 : i32 to vector<16x16xi32>
    %26 = arith.subi %21, %25 : vector<16x16xi32>
    %27 = arith.cmpi eq, %22, %26 : vector<16x16xi32>
    %c1_i32_5 = arith.constant 1 : i32
    %28 = vector.broadcast %c1_i32_5 : i32 to vector<16x16xi32>
    %29 = arith.cmpi sge, %24, %28 : vector<16x16xi32>
    %30 = arith.andi %27, %29 : vector<16x16xi1>
    %cst = arith.constant 1.000000e+00 : f32
    %cst_6 = arith.constant 0.000000e+00 : f32
    %31 = vector.broadcast %cst : f32 to vector<16x16xf32>
    %32 = vector.broadcast %cst_6 : f32 to vector<16x16xf32>
    %33 = arith.select %30, %31, %32 : vector<16x16xi1>, vector<16x16xf32>
    %cst_7 = arith.constant dense<0.000000e+00> : vector<16x32xf32>
    %34 = tpu.matmul %33, %0, %cst_7 {dimension_numbers = #tpu.dot_dimension_numbers<[1], [0], [0], [1], [0, 0, 1, 1], [], []>} : vector<16x16xf32>, vector<16x32xf32>, vector<16x32xf32> -> vector<16x32xf32>
    %c2_i32 = arith.constant 2 : i32
    %35 = vector.broadcast %c2_i32 : i32 to vector<16x16xi32>
    %36 = arith.subi %21, %35 : vector<16x16xi32>
    %37 = arith.cmpi eq, %22, %36 : vector<16x16xi32>
    %c2_i32_8 = arith.constant 2 : i32
    %38 = vector.broadcast %c2_i32_8 : i32 to vector<16x16xi32>
    %39 = arith.cmpi sge, %24, %38 : vector<16x16xi32>
    %40 = arith.andi %37, %39 : vector<16x16xi1>
    %cst_9 = arith.constant 1.000000e+00 : f32
    %cst_10 = arith.constant 0.000000e+00 : f32
    %41 = vector.broadcast %cst_9 : f32 to vector<16x16xf32>
    %42 = vector.broadcast %cst_10 : f32 to vector<16x16xf32>
    %43 = arith.select %40, %41, %42 : vector<16x16xi1>, vector<16x16xf32>
    %cst_11 = arith.constant dense<0.000000e+00> : vector<16x32xf32>
    %44 = tpu.matmul %43, %0, %cst_11 {dimension_numbers = #tpu.dot_dimension_numbers<[1], [0], [0], [1], [0, 0, 1, 1], [], []>} : vector<16x16xf32>, vector<16x32xf32>, vector<16x32xf32> -> vector<16x32xf32>
    %c3_i32 = arith.constant 3 : i32
    %45 = vector.broadcast %c3_i32 : i32 to vector<16x16xi32>
    %46 = arith.subi %21, %45 : vector<16x16xi32>
    %47 = arith.cmpi eq, %22, %46 : vector<16x16xi32>
    %c3_i32_12 = arith.constant 3 : i32
    %48 = vector.broadcast %c3_i32_12 : i32 to vector<16x16xi32>
    %49 = arith.cmpi sge, %24, %48 : vector<16x16xi32>
    %50 = arith.andi %47, %49 : vector<16x16xi1>
    %cst_13 = arith.constant 1.000000e+00 : f32
    %cst_14 = arith.constant 0.000000e+00 : f32
    %51 = vector.broadcast %cst_13 : f32 to vector<16x16xf32>
    %52 = vector.broadcast %cst_14 : f32 to vector<16x16xf32>
    %53 = arith.select %50, %51, %52 : vector<16x16xi1>, vector<16x16xf32>
    %cst_15 = arith.constant dense<0.000000e+00> : vector<16x32xf32>
    %54 = tpu.matmul %53, %0, %cst_15 {dimension_numbers = #tpu.dot_dimension_numbers<[1], [0], [0], [1], [0, 0, 1, 1], [], []>} : vector<16x16xf32>, vector<16x32xf32>, vector<16x32xf32> -> vector<16x32xf32>
    %55 = tpu.concatenate %0, %34, %44, %54 in 1 : vector<16x32xf32>, vector<16x32xf32>, vector<16x32xf32>, vector<16x32xf32> -> vector<16x128xf32>
    %c0_16 = arith.constant 0 : index
    %c0_17 = arith.constant 0 : index
    %56 = vector.load %arg3[%c0_16, %c0_17] : memref<128x160xf32, #tpu.memory_space<vmem>>, vector<128x160xf32>
    %cst_18 = arith.constant dense<0.000000e+00> : vector<16x160xf32>
    %57 = tpu.matmul %55, %56, %cst_18 {dimension_numbers = #tpu.dot_dimension_numbers<[1], [0], [0], [1], [0, 0, 1, 1], [], []>} : vector<16x128xf32>, vector<128x160xf32>, vector<16x160xf32> -> vector<16x160xf32>
    %58 = vector.extract_strided_slice %57 {offsets = [0, 0], sizes = [16, 32], strides = [1, 1]} : vector<16x160xf32> to vector<16x32xf32>
    %59 = vector.broadcast %17 : vector<1x32xf32> to vector<16x32xf32>
    %60 = arith.addf %58, %59 : vector<16x32xf32>
    %61 = vector.extract_strided_slice %57 {offsets = [0, 32], sizes = [16, 32], strides = [1, 1]} : vector<16x160xf32> to vector<16x32xf32>
    %62 = vector.broadcast %18 : vector<1x32xf32> to vector<16x32xf32>
    %63 = arith.addf %61, %62 : vector<16x32xf32>
    %64 = vector.extract_strided_slice %57 {offsets = [0, 64], sizes = [16, 32], strides = [1, 1]} : vector<16x160xf32> to vector<16x32xf32>
    %65 = vector.broadcast %19 : vector<1x32xf32> to vector<16x32xf32>
    %66 = arith.addf %64, %65 : vector<16x32xf32>
    %67 = vector.extract_strided_slice %57 {offsets = [0, 96], sizes = [16, 32], strides = [1, 1]} : vector<16x160xf32> to vector<16x32xf32>
    %68 = vector.extract_strided_slice %57 {offsets = [0, 128], sizes = [16, 32], strides = [1, 1]} : vector<16x160xf32> to vector<16x32xf32>
    %69 = vector.broadcast %20 : vector<1x32xf32> to vector<16x32xf32>
    %70 = arith.addf %68, %69 : vector<16x32xf32>
    %cst_19 = arith.constant 5.000000e-01 : f32
    %71 = vector.broadcast %cst_19 : f32 to vector<16x32xf32>
    %72 = arith.mulf %71, %70 : vector<16x32xf32>
    %cst_20 = arith.constant 0.707106769 : f32
    %73 = vector.broadcast %cst_20 : f32 to vector<16x32xf32>
    %74 = arith.mulf %70, %73 : vector<16x32xf32>
    %cst_21 = arith.constant 0.000000e+00 : f32
    %75 = vector.broadcast %cst_21 : f32 to vector<16x32xf32>
    %76 = arith.cmpf oge, %74, %75 : vector<16x32xf32>
    %cst_22 = arith.constant 1.000000e+00 : f32
    %cst_23 = arith.constant -1.000000e+00 : f32
    %77 = vector.broadcast %cst_22 : f32 to vector<16x32xf32>
    %78 = vector.broadcast %cst_23 : f32 to vector<16x32xf32>
    %79 = arith.select %76, %77, %78 : vector<16x32xi1>, vector<16x32xf32>
    %80 = math.absf %74 : vector<16x32xf32>
    %cst_24 = arith.constant 0.327591091 : f32
    %81 = vector.broadcast %cst_24 : f32 to vector<16x32xf32>
    %82 = arith.mulf %81, %80 : vector<16x32xf32>
    %cst_25 = arith.constant 1.000000e+00 : f32
    %83 = vector.broadcast %cst_25 : f32 to vector<16x32xf32>
    %84 = arith.addf %83, %82 : vector<16x32xf32>
    %cst_26 = arith.constant 1.000000e+00 : f32
    %85 = vector.broadcast %cst_26 : f32 to vector<16x32xf32>
    %86 = arith.divf %85, %84 : vector<16x32xf32>
    %cst_27 = arith.constant 1.06140542 : f32
    %87 = vector.broadcast %cst_27 : f32 to vector<16x32xf32>
    %88 = arith.mulf %87, %86 : vector<16x32xf32>
    %cst_28 = arith.constant -1.45315206 : f32
    %89 = vector.broadcast %cst_28 : f32 to vector<16x32xf32>
    %90 = arith.addf %88, %89 : vector<16x32xf32>
    %91 = arith.mulf %90, %86 : vector<16x32xf32>
    %cst_29 = arith.constant 1.42141378 : f32
    %92 = vector.broadcast %cst_29 : f32 to vector<16x32xf32>
    %93 = arith.addf %91, %92 : vector<16x32xf32>
    %94 = arith.mulf %93, %86 : vector<16x32xf32>
    %cst_30 = arith.constant -0.284496725 : f32
    %95 = vector.broadcast %cst_30 : f32 to vector<16x32xf32>
    %96 = arith.addf %94, %95 : vector<16x32xf32>
    %97 = arith.mulf %96, %86 : vector<16x32xf32>
    %cst_31 = arith.constant 0.254829586 : f32
    %98 = vector.broadcast %cst_31 : f32 to vector<16x32xf32>
    %99 = arith.addf %97, %98 : vector<16x32xf32>
    %100 = arith.mulf %99, %86 : vector<16x32xf32>
    %cst_32 = arith.constant 0.000000e+00 : f32
    %101 = vector.broadcast %cst_32 : f32 to vector<16x32xf32>
    %102 = arith.subf %101, %80 : vector<16x32xf32>
    %103 = arith.mulf %102, %80 : vector<16x32xf32>
    %104 = math.exp %103 : vector<16x32xf32>
    %105 = arith.mulf %100, %104 : vector<16x32xf32>
    %cst_33 = arith.constant 1.000000e+00 : f32
    %106 = vector.broadcast %cst_33 : f32 to vector<16x32xf32>
    %107 = arith.subf %106, %105 : vector<16x32xf32>
    %108 = arith.mulf %79, %107 : vector<16x32xf32>
    %cst_34 = arith.constant 1.000000e+00 : f32
    %109 = vector.broadcast %cst_34 : f32 to vector<16x32xf32>
    %110 = arith.addf %109, %108 : vector<16x32xf32>
    %111 = arith.mulf %72, %110 : vector<16x32xf32>
    %112 = vector.extract_strided_slice %60 {offsets = [0, 0], sizes = [8, 8], strides = [1, 1]} : vector<16x32xf32> to vector<8x8xf32>
    %113 = vector.extract_strided_slice %63 {offsets = [0, 0], sizes = [8, 8], strides = [1, 1]} : vector<16x32xf32> to vector<8x8xf32>
    "tpu.trace_start"() <{level = 10 : i32, message = "ld,md->lm"}> : () -> ()
    %cst_35 = arith.constant dense<0.000000e+00> : vector<8x8xf32>
    %114 = tpu.matmul %112, %113, %cst_35 {dimension_numbers = #tpu.dot_dimension_numbers<[1], [1], [0], [0], [0, 0, 1, 0], [], []>} : vector<8x8xf32>, vector<8x8xf32>, vector<8x8xf32> -> vector<8x8xf32>
    "tpu.trace_stop"() : () -> ()
    %cst_36 = arith.constant 0.353553385 : f32
    %115 = vector.broadcast %cst_36 : f32 to vector<8x8xf32>
    %116 = arith.mulf %114, %115 : vector<8x8xf32>
    %117 = vector.extract_strided_slice %60 {offsets = [0, 8], sizes = [8, 8], strides = [1, 1]} : vector<16x32xf32> to vector<8x8xf32>
    %118 = vector.extract_strided_slice %63 {offsets = [0, 8], sizes = [8, 8], strides = [1, 1]} : vector<16x32xf32> to vector<8x8xf32>
    "tpu.trace_start"() <{level = 10 : i32, message = "ld,md->lm"}> : () -> ()
    %cst_37 = arith.constant dense<0.000000e+00> : vector<8x8xf32>
    %119 = tpu.matmul %117, %118, %cst_37 {dimension_numbers = #tpu.dot_dimension_numbers<[1], [1], [0], [0], [0, 0, 1, 0], [], []>} : vector<8x8xf32>, vector<8x8xf32>, vector<8x8xf32> -> vector<8x8xf32>
    "tpu.trace_stop"() : () -> ()
    %cst_38 = arith.constant 0.353553385 : f32
    %120 = vector.broadcast %cst_38 : f32 to vector<8x8xf32>
    %121 = arith.mulf %119, %120 : vector<8x8xf32>
    %122 = vector.extract_strided_slice %60 {offsets = [0, 16], sizes = [8, 8], strides = [1, 1]} : vector<16x32xf32> to vector<8x8xf32>
    %123 = vector.extract_strided_slice %63 {offsets = [0, 16], sizes = [8, 8], strides = [1, 1]} : vector<16x32xf32> to vector<8x8xf32>
    "tpu.trace_start"() <{level = 10 : i32, message = "ld,md->lm"}> : () -> ()
    %cst_39 = arith.constant dense<0.000000e+00> : vector<8x8xf32>
    %124 = tpu.matmul %122, %123, %cst_39 {dimension_numbers = #tpu.dot_dimension_numbers<[1], [1], [0], [0], [0, 0, 1, 0], [], []>} : vector<8x8xf32>, vector<8x8xf32>, vector<8x8xf32> -> vector<8x8xf32>
    "tpu.trace_stop"() : () -> ()
    %cst_40 = arith.constant 0.353553385 : f32
    %125 = vector.broadcast %cst_40 : f32 to vector<8x8xf32>
    %126 = arith.mulf %124, %125 : vector<8x8xf32>
    %127 = vector.extract_strided_slice %60 {offsets = [0, 24], sizes = [8, 8], strides = [1, 1]} : vector<16x32xf32> to vector<8x8xf32>
    %128 = vector.extract_strided_slice %63 {offsets = [0, 24], sizes = [8, 8], strides = [1, 1]} : vector<16x32xf32> to vector<8x8xf32>
    "tpu.trace_start"() <{level = 10 : i32, message = "ld,md->lm"}> : () -> ()
    %cst_41 = arith.constant dense<0.000000e+00> : vector<8x8xf32>
    %129 = tpu.matmul %127, %128, %cst_41 {dimension_numbers = #tpu.dot_dimension_numbers<[1], [1], [0], [0], [0, 0, 1, 0], [], []>} : vector<8x8xf32>, vector<8x8xf32>, vector<8x8xf32> -> vector<8x8xf32>
    "tpu.trace_stop"() : () -> ()
    %cst_42 = arith.constant 0.353553385 : f32
    %130 = vector.broadcast %cst_42 : f32 to vector<8x8xf32>
    %131 = arith.mulf %129, %130 : vector<8x8xf32>
    %132 = vector.extract_strided_slice %60 {offsets = [8, 0], sizes = [8, 8], strides = [1, 1]} : vector<16x32xf32> to vector<8x8xf32>
    %133 = vector.extract_strided_slice %63 {offsets = [8, 0], sizes = [8, 8], strides = [1, 1]} : vector<16x32xf32> to vector<8x8xf32>
    "tpu.trace_start"() <{level = 10 : i32, message = "ld,md->lm"}> : () -> ()
    %cst_43 = arith.constant dense<0.000000e+00> : vector<8x8xf32>
    %134 = tpu.matmul %132, %133, %cst_43 {dimension_numbers = #tpu.dot_dimension_numbers<[1], [1], [0], [0], [0, 0, 1, 0], [], []>} : vector<8x8xf32>, vector<8x8xf32>, vector<8x8xf32> -> vector<8x8xf32>
    "tpu.trace_stop"() : () -> ()
    %cst_44 = arith.constant 0.353553385 : f32
    %135 = vector.broadcast %cst_44 : f32 to vector<8x8xf32>
    %136 = arith.mulf %134, %135 : vector<8x8xf32>
    %137 = vector.extract_strided_slice %60 {offsets = [8, 8], sizes = [8, 8], strides = [1, 1]} : vector<16x32xf32> to vector<8x8xf32>
    %138 = vector.extract_strided_slice %63 {offsets = [8, 8], sizes = [8, 8], strides = [1, 1]} : vector<16x32xf32> to vector<8x8xf32>
    "tpu.trace_start"() <{level = 10 : i32, message = "ld,md->lm"}> : () -> ()
    %cst_45 = arith.constant dense<0.000000e+00> : vector<8x8xf32>
    %139 = tpu.matmul %137, %138, %cst_45 {dimension_numbers = #tpu.dot_dimension_numbers<[1], [1], [0], [0], [0, 0, 1, 0], [], []>} : vector<8x8xf32>, vector<8x8xf32>, vector<8x8xf32> -> vector<8x8xf32>
    "tpu.trace_stop"() : () -> ()
    %cst_46 = arith.constant 0.353553385 : f32
    %140 = vector.broadcast %cst_46 : f32 to vector<8x8xf32>
    %141 = arith.mulf %139, %140 : vector<8x8xf32>
    %142 = vector.extract_strided_slice %60 {offsets = [8, 16], sizes = [8, 8], strides = [1, 1]} : vector<16x32xf32> to vector<8x8xf32>
    %143 = vector.extract_strided_slice %63 {offsets = [8, 16], sizes = [8, 8], strides = [1, 1]} : vector<16x32xf32> to vector<8x8xf32>
    "tpu.trace_start"() <{level = 10 : i32, message = "ld,md->lm"}> : () -> ()
    %cst_47 = arith.constant dense<0.000000e+00> : vector<8x8xf32>
    %144 = tpu.matmul %142, %143, %cst_47 {dimension_numbers = #tpu.dot_dimension_numbers<[1], [1], [0], [0], [0, 0, 1, 0], [], []>} : vector<8x8xf32>, vector<8x8xf32>, vector<8x8xf32> -> vector<8x8xf32>
    "tpu.trace_stop"() : () -> ()
    %cst_48 = arith.constant 0.353553385 : f32
    %145 = vector.broadcast %cst_48 : f32 to vector<8x8xf32>
    %146 = arith.mulf %144, %145 : vector<8x8xf32>
    %147 = vector.extract_strided_slice %60 {offsets = [8, 24], sizes = [8, 8], strides = [1, 1]} : vector<16x32xf32> to vector<8x8xf32>
    %148 = vector.extract_strided_slice %63 {offsets = [8, 24], sizes = [8, 8], strides = [1, 1]} : vector<16x32xf32> to vector<8x8xf32>
    "tpu.trace_start"() <{level = 10 : i32, message = "ld,md->lm"}> : () -> ()
    %cst_49 = arith.constant dense<0.000000e+00> : vector<8x8xf32>
    %149 = tpu.matmul %147, %148, %cst_49 {dimension_numbers = #tpu.dot_dimension_numbers<[1], [1], [0], [0], [0, 0, 1, 0], [], []>} : vector<8x8xf32>, vector<8x8xf32>, vector<8x8xf32> -> vector<8x8xf32>
    "tpu.trace_stop"() : () -> ()
    %cst_50 = arith.constant 0.353553385 : f32
    %150 = vector.broadcast %cst_50 : f32 to vector<8x8xf32>
    %151 = arith.mulf %149, %150 : vector<8x8xf32>
    %152 = tpu.concatenate %116, %121, %126, %131, %136, %141, %146, %151 in 0 : vector<8x8xf32>, vector<8x8xf32>, vector<8x8xf32>, vector<8x8xf32>, vector<8x8xf32>, vector<8x8xf32>, vector<8x8xf32>, vector<8x8xf32> -> vector<64x8xf32>
    %cst_51 = arith.constant dense<0xFF800000> : vector<64xf32>
    %153 = vector.multi_reduction <maximumf>, %152, %cst_51 [1] : vector<64x8xf32> to vector<64xf32>
    %154 = vector.shape_cast %153 : vector<64xf32> to vector<64x1xf32>
    %155 = vector.broadcast %154 : vector<64x1xf32> to vector<64x8xf32>
    %156 = arith.subf %152, %155 : vector<64x8xf32>
    %157 = math.exp %156 : vector<64x8xf32>
    %cst_52 = arith.constant dense<0.000000e+00> : vector<64xf32>
    %158 = vector.multi_reduction <add>, %157, %cst_52 [1] : vector<64x8xf32> to vector<64xf32>
    %159 = vector.shape_cast %158 : vector<64xf32> to vector<64x1xf32>
    %160 = tpu.reciprocal %159 : vector<64x1xf32> -> vector<64x1xf32>
    %161 = vector.broadcast %160 : vector<64x1xf32> to vector<64x8xf32>
    %162 = arith.mulf %157, %161 : vector<64x8xf32>
    %163 = vector.extract_strided_slice %162 {offsets = [0, 0], sizes = [8, 8], strides = [1, 1]} : vector<64x8xf32> to vector<8x8xf32>
    %164 = vector.extract_strided_slice %66 {offsets = [0, 0], sizes = [8, 8], strides = [1, 1]} : vector<16x32xf32> to vector<8x8xf32>
    %cst_53 = arith.constant dense<0.000000e+00> : vector<8x8xf32>
    %165 = tpu.matmul %163, %164, %cst_53 {dimension_numbers = #tpu.dot_dimension_numbers<[1], [0], [0], [1], [0, 0, 1, 1], [], []>} : vector<8x8xf32>, vector<8x8xf32>, vector<8x8xf32> -> vector<8x8xf32>
    %166 = vector.extract_strided_slice %162 {offsets = [8, 0], sizes = [8, 8], strides = [1, 1]} : vector<64x8xf32> to vector<8x8xf32>
    %167 = vector.extract_strided_slice %66 {offsets = [0, 8], sizes = [8, 8], strides = [1, 1]} : vector<16x32xf32> to vector<8x8xf32>
    %cst_54 = arith.constant dense<0.000000e+00> : vector<8x8xf32>
    %168 = tpu.matmul %166, %167, %cst_54 {dimension_numbers = #tpu.dot_dimension_numbers<[1], [0], [0], [1], [0, 0, 1, 1], [], []>} : vector<8x8xf32>, vector<8x8xf32>, vector<8x8xf32> -> vector<8x8xf32>
    %169 = vector.extract_strided_slice %162 {offsets = [16, 0], sizes = [8, 8], strides = [1, 1]} : vector<64x8xf32> to vector<8x8xf32>
    %170 = vector.extract_strided_slice %66 {offsets = [0, 16], sizes = [8, 8], strides = [1, 1]} : vector<16x32xf32> to vector<8x8xf32>
    %cst_55 = arith.constant dense<0.000000e+00> : vector<8x8xf32>
    %171 = tpu.matmul %169, %170, %cst_55 {dimension_numbers = #tpu.dot_dimension_numbers<[1], [0], [0], [1], [0, 0, 1, 1], [], []>} : vector<8x8xf32>, vector<8x8xf32>, vector<8x8xf32> -> vector<8x8xf32>
    %172 = vector.extract_strided_slice %162 {offsets = [24, 0], sizes = [8, 8], strides = [1, 1]} : vector<64x8xf32> to vector<8x8xf32>
    %173 = vector.extract_strided_slice %66 {offsets = [0, 24], sizes = [8, 8], strides = [1, 1]} : vector<16x32xf32> to vector<8x8xf32>
    %cst_56 = arith.constant dense<0.000000e+00> : vector<8x8xf32>
    %174 = tpu.matmul %172, %173, %cst_56 {dimension_numbers = #tpu.dot_dimension_numbers<[1], [0], [0], [1], [0, 0, 1, 1], [], []>} : vector<8x8xf32>, vector<8x8xf32>, vector<8x8xf32> -> vector<8x8xf32>
    %175 = tpu.concatenate %165, %168, %171, %174 in 1 : vector<8x8xf32>, vector<8x8xf32>, vector<8x8xf32>, vector<8x8xf32> -> vector<8x32xf32>
    %176 = vector.extract_strided_slice %162 {offsets = [32, 0], sizes = [8, 8], strides = [1, 1]} : vector<64x8xf32> to vector<8x8xf32>
    %177 = vector.extract_strided_slice %66 {offsets = [8, 0], sizes = [8, 8], strides = [1, 1]} : vector<16x32xf32> to vector<8x8xf32>
    %cst_57 = arith.constant dense<0.000000e+00> : vector<8x8xf32>
    %178 = tpu.matmul %176, %177, %cst_57 {dimension_numbers = #tpu.dot_dimension_numbers<[1], [0], [0], [1], [0, 0, 1, 1], [], []>} : vector<8x8xf32>, vector<8x8xf32>, vector<8x8xf32> -> vector<8x8xf32>
    %179 = vector.extract_strided_slice %162 {offsets = [40, 0], sizes = [8, 8], strides = [1, 1]} : vector<64x8xf32> to vector<8x8xf32>
    %180 = vector.extract_strided_slice %66 {offsets = [8, 8], sizes = [8, 8], strides = [1, 1]} : vector<16x32xf32> to vector<8x8xf32>
    %cst_58 = arith.constant dense<0.000000e+00> : vector<8x8xf32>
    %181 = tpu.matmul %179, %180, %cst_58 {dimension_numbers = #tpu.dot_dimension_numbers<[1], [0], [0], [1], [0, 0, 1, 1], [], []>} : vector<8x8xf32>, vector<8x8xf32>, vector<8x8xf32> -> vector<8x8xf32>
    %182 = vector.extract_strided_slice %162 {offsets = [48, 0], sizes = [8, 8], strides = [1, 1]} : vector<64x8xf32> to vector<8x8xf32>
    %183 = vector.extract_strided_slice %66 {offsets = [8, 16], sizes = [8, 8], strides = [1, 1]} : vector<16x32xf32> to vector<8x8xf32>
    %cst_59 = arith.constant dense<0.000000e+00> : vector<8x8xf32>
    %184 = tpu.matmul %182, %183, %cst_59 {dimension_numbers = #tpu.dot_dimension_numbers<[1], [0], [0], [1], [0, 0, 1, 1], [], []>} : vector<8x8xf32>, vector<8x8xf32>, vector<8x8xf32> -> vector<8x8xf32>
    %185 = vector.extract_strided_slice %162 {offsets = [56, 0], sizes = [8, 8], strides = [1, 1]} : vector<64x8xf32> to vector<8x8xf32>
    %186 = vector.extract_strided_slice %66 {offsets = [8, 24], sizes = [8, 8], strides = [1, 1]} : vector<16x32xf32> to vector<8x8xf32>
    %cst_60 = arith.constant dense<0.000000e+00> : vector<8x8xf32>
    %187 = tpu.matmul %185, %186, %cst_60 {dimension_numbers = #tpu.dot_dimension_numbers<[1], [0], [0], [1], [0, 0, 1, 1], [], []>} : vector<8x8xf32>, vector<8x8xf32>, vector<8x8xf32> -> vector<8x8xf32>
    %188 = tpu.concatenate %178, %181, %184, %187 in 1 : vector<8x8xf32>, vector<8x8xf32>, vector<8x8xf32>, vector<8x8xf32> -> vector<8x32xf32>
    %189 = tpu.concatenate %175, %188 in 0 : vector<8x32xf32>, vector<8x32xf32> -> vector<16x32xf32>
    %cst_61 = arith.constant dense<0.000000e+00> : vector<16x32xf32>
    %190 = tpu.matmul %189, %3, %cst_61 {dimension_numbers = #tpu.dot_dimension_numbers<[1], [0], [0], [1], [0, 0, 1, 1], [], []>} : vector<16x32xf32>, vector<32x32xf32>, vector<16x32xf32> -> vector<16x32xf32>
    %191 = vector.broadcast %5 : vector<1x32xf32> to vector<16x32xf32>
    %192 = arith.addf %190, %191 : vector<16x32xf32>
    %193 = arith.addf %192, %111 : vector<16x32xf32>
    %194 = arith.addf %193, %67 : vector<16x32xf32>
    %cst_62 = arith.constant dense<0.000000e+00> : vector<16xf32>
    %195 = vector.multi_reduction <add>, %194, %cst_62 [1] : vector<16x32xf32> to vector<16xf32>
    %196 = vector.shape_cast %195 : vector<16xf32> to vector<16x1xf32>
    %cst_63 = arith.constant 3.200000e+01 : f32
    %197 = vector.broadcast %cst_63 : f32 to vector<16x1xf32>
    %198 = arith.divf %196, %197 : vector<16x1xf32>
    %199 = vector.broadcast %198 : vector<16x1xf32> to vector<16x32xf32>
    %200 = arith.subf %194, %199 : vector<16x32xf32>
    %201 = arith.mulf %200, %200 : vector<16x32xf32>
    %cst_64 = arith.constant dense<0.000000e+00> : vector<16xf32>
    %202 = vector.multi_reduction <add>, %201, %cst_64 [1] : vector<16x32xf32> to vector<16xf32>
    %203 = vector.shape_cast %202 : vector<16xf32> to vector<16x1xf32>
    %cst_65 = arith.constant 3.200000e+01 : f32
    %204 = vector.broadcast %cst_65 : f32 to vector<16x1xf32>
    %205 = arith.divf %203, %204 : vector<16x1xf32>
    %206 = vector.broadcast %198 : vector<16x1xf32> to vector<16x32xf32>
    %207 = arith.subf %194, %206 : vector<16x32xf32>
    %cst_66 = arith.constant 9.99999974E-6 : f32
    %208 = vector.broadcast %cst_66 : f32 to vector<16x1xf32>
    %209 = arith.addf %205, %208 : vector<16x1xf32>
    %210 = math.rsqrt %209 : vector<16x1xf32>
    %211 = vector.broadcast %210 : vector<16x1xf32> to vector<16x32xf32>
    %212 = arith.mulf %207, %211 : vector<16x32xf32>
    %213 = vector.broadcast %13 : vector<1x32xf32> to vector<16x32xf32>
    %214 = arith.mulf %212, %213 : vector<16x32xf32>
    %215 = vector.broadcast %14 : vector<1x32xf32> to vector<16x32xf32>
    %216 = arith.addf %214, %215 : vector<16x32xf32>
    %217 = vector.broadcast %6 : vector<1x32xf32> to vector<16x32xf32>
    %218 = arith.mulf %217, %216 : vector<16x32xf32>
    %219 = vector.broadcast %7 : vector<1x32xf32> to vector<16x32xf32>
    %220 = arith.addf %218, %219 : vector<16x32xf32>
    %221 = math.exp %220 : vector<16x32xf32>
    %222 = vector.broadcast %8 : vector<1x32xf32> to vector<16x32xf32>
    %223 = arith.mulf %222, %1 : vector<16x32xf32>
    %224 = vector.broadcast %9 : vector<1x32xf32> to vector<16x32xf32>
    %225 = arith.addf %223, %224 : vector<16x32xf32>
    %226 = math.exp %225 : vector<16x32xf32>
    %227 = vector.broadcast %10 : vector<1x32xf32> to vector<16x32xf32>
    %228 = arith.mulf %227, %216 : vector<16x32xf32>
    %229 = vector.broadcast %11 : vector<1x32xf32> to vector<16x32xf32>
    %230 = arith.addf %228, %229 : vector<16x32xf32>
    %231 = math.exp %230 : vector<16x32xf32>
    %232 = tpu.concatenate %216, %1 in 1 : vector<16x32xf32>, vector<16x32xf32> -> vector<16x64xf32>
    %cst_67 = arith.constant dense<0.000000e+00> : vector<16x32xf32>
    %233 = tpu.matmul %232, %4, %cst_67 {dimension_numbers = #tpu.dot_dimension_numbers<[1], [0], [0], [1], [0, 0, 1, 1], [], []>} : vector<16x64xf32>, vector<64x32xf32>, vector<16x32xf32> -> vector<16x32xf32>
    %234 = vector.broadcast %12 : vector<1x32xf32> to vector<16x32xf32>
    %235 = arith.addf %233, %234 : vector<16x32xf32>
    %236 = math.tanh %235 : vector<16x32xf32>
    %237 = arith.mulf %226, %1 : vector<16x32xf32>
    %238 = arith.mulf %221, %236 : vector<16x32xf32>
    %239 = arith.addf %237, %238 : vector<16x32xf32>
    %240 = math.tanh %239 : vector<16x32xf32>
    %241 = arith.mulf %231, %240 : vector<16x32xf32>
    %242 = arith.addf %241, %0 : vector<16x32xf32>
    %cst_68 = arith.constant dense<0.000000e+00> : vector<16xf32>
    %243 = vector.multi_reduction <add>, %242, %cst_68 [1] : vector<16x32xf32> to vector<16xf32>
    %244 = vector.shape_cast %243 : vector<16xf32> to vector<16x1xf32>
    %cst_69 = arith.constant 3.200000e+01 : f32
    %245 = vector.broadcast %cst_69 : f32 to vector<16x1xf32>
    %246 = arith.divf %244, %245 : vector<16x1xf32>
    %247 = vector.broadcast %246 : vector<16x1xf32> to vector<16x32xf32>
    %248 = arith.subf %242, %247 : vector<16x32xf32>
    %249 = arith.mulf %248, %248 : vector<16x32xf32>
    %cst_70 = arith.constant dense<0.000000e+00> : vector<16xf32>
    %250 = vector.multi_reduction <add>, %249, %cst_70 [1] : vector<16x32xf32> to vector<16xf32>
    %251 = vector.shape_cast %250 : vector<16xf32> to vector<16x1xf32>
    %cst_71 = arith.constant 3.200000e+01 : f32
    %252 = vector.broadcast %cst_71 : f32 to vector<16x1xf32>
    %253 = arith.divf %251, %252 : vector<16x1xf32>
    %254 = vector.broadcast %246 : vector<16x1xf32> to vector<16x32xf32>
    %255 = arith.subf %242, %254 : vector<16x32xf32>
    %cst_72 = arith.constant 9.99999974E-6 : f32
    %256 = vector.broadcast %cst_72 : f32 to vector<16x1xf32>
    %257 = arith.addf %253, %256 : vector<16x1xf32>
    %258 = math.rsqrt %257 : vector<16x1xf32>
    %259 = vector.broadcast %258 : vector<16x1xf32> to vector<16x32xf32>
    %260 = arith.mulf %255, %259 : vector<16x32xf32>
    %261 = vector.broadcast %15 : vector<1x32xf32> to vector<16x32xf32>
    %262 = arith.mulf %260, %261 : vector<16x32xf32>
    %263 = vector.broadcast %16 : vector<1x32xf32> to vector<16x32xf32>
    %264 = arith.addf %262, %263 : vector<16x32xf32>
    %265 = tpu.concatenate %264, %239 in 1 : vector<16x32xf32>, vector<16x32xf32> -> vector<16x64xf32>
    %c0_73 = arith.constant 0 : index
    %c0_74 = arith.constant 0 : index
    %266 = vector.load %arg5[%c0_73, %c0_74] : memref<16x64xf32, #tpu.memory_space<vmem>>, vector<16x64xf32>
    tpu.vector_store %arg5[%c0_73, %c0_74], %265 {strides = array<i32>} : memref<16x64xf32, #tpu.memory_space<vmem>>, vector<16x64xf32>,
    return
  }
  func.func @transform_0(%arg0: i32) -> (i32, i32) {
    %c0_i32 = arith.constant 0 : i32
    %c0_i32_0 = arith.constant 0 : i32
    %c0_i32_1 = arith.constant 0 : i32
    return %c0_i32, %c0_i32_0 : i32, i32
  }
  func.func @transform_1(%arg0: i32) -> (i32, i32) {
    %c0_i32 = arith.constant 0 : i32
    %c0_i32_0 = arith.constant 0 : i32
    %c0_i32_1 = arith.constant 0 : i32
    return %c0_i32, %c0_i32_0 : i32, i32
  }
  func.func @transform_2(%arg0: i32) -> (i32, i32) {
    %c0_i32 = arith.constant 0 : i32
    %c0_i32_0 = arith.constant 0 : i32
    %c0_i32_1 = arith.constant 0 : i32
    return %c0_i32, %c0_i32_0 : i32, i32
  }
  func.func @transform_3(%arg0: i32) -> (i32, i32) {
    %c0_i32 = arith.constant 0 : i32
    %c0_i32_0 = arith.constant 0 : i32
    %c0_i32_1 = arith.constant 0 : i32
    return %c0_i32, %c0_i32_0 : i32, i32
  }
  func.func @transform_4(%arg0: i32) -> (i32, i32) {
    %c0_i32 = arith.constant 0 : i32
    %c0_i32_0 = arith.constant 0 : i32
    %c0_i32_1 = arith.constant 0 : i32
    return %c0_i32, %c0_i32_0 : i32, i32
  }
}

</mosaic_0001>

<llo_original>
// kernel: mlstm_layer_forward.1
$region0: #{mlstm_layer_forward.1}
  #allocation0 [shape = 'u32[]', space=smem, size = 0x4, offset = 0x4, fixed_abs, tag = 'smem constant byte address 0x4 - core index']
  #allocation1 [shape = 'u32[72,128]{1,0:T(1,128)}', space=vmem, size = 0x9000, scoped, tag = 'internal scratch']
  %s0 = inlined_call_operand.vmem [shape: f32[16,32], index: 0, kind: input, shape index: {}]
  %s1 = inlined_call_operand.vmem [shape: f32[16,32], index: 1, kind: input, shape index: {}]
  %s2 = inlined_call_operand.vmem [shape: f32[128,160], index: 2, kind: input, shape index: {}]
  %s3 = inlined_call_operand.vmem [shape: f32[112,32], index: 3, kind: input, shape index: {}]
  %s4 = inlined_call_operand.vmem [shape: f32[16,64], index: 4, kind: output, shape index: {}]
  %s5 = sld [smem:[#allocation0]]
  $region26: #{mlstm_layer_forward.1} parent=0
    _
  %s7 = ssub.s32 1, %s5
  %s8 = scalar_select 0, %s7, %s5
  // Predicated region
  $region2: #{mlstm_layer_forward.1} parent=0 // pred_check
    _
  $region3: #{mlstm_layer_forward.1} parent=0 // pred_check_branch
    %10 = sbr.rel (0) target = $region5
  $region4: #{mlstm_layer_forward.1} parent=0 // pred_region
    _
  $region5: #{mlstm_layer_forward.1} parent=0 // pred_fallthru
    _
  // Predicated region
  $region6: #{mlstm_layer_forward.1} parent=0 // pred_check
    _
  $region7: #{mlstm_layer_forward.1} parent=0 // pred_check_branch
    %12 = sbr.rel (0) target = $region9
  $region8: #{mlstm_layer_forward.1} parent=0 // pred_region
    _
  $region9: #{mlstm_layer_forward.1} parent=0 // pred_fallthru
    _
  // Predicated region
  $region10: #{mlstm_layer_forward.1} parent=0 // pred_check
    _
  $region11: #{mlstm_layer_forward.1} parent=0 // pred_check_branch
    %14 = sbr.rel (0) target = $region13
  $region12: #{mlstm_layer_forward.1} parent=0 // pred_region
    _
  $region13: #{mlstm_layer_forward.1} parent=0 // pred_fallthru
    _
  // Predicated region
  $region14: #{mlstm_layer_forward.1} parent=0 // pred_check
    _
  $region15: #{mlstm_layer_forward.1} parent=0 // pred_check_branch
    %16 = sbr.rel (0) target = $region17
  $region16: #{mlstm_layer_forward.1} parent=0 // pred_region
    _
  $region17: #{mlstm_layer_forward.1} parent=0 // pred_fallthru
    _
  %v17 = vld [vmem:[%s0] sm:$0xff]
  %v18 = vld [vmem:[%s0 + $0x8] sm:$0xff]
  %v19 = vld [vmem:[%s1] sm:$0xff]
  %v20 = vld [vmem:[%s1 + $0x8] sm:$0xff]
  %v21 = vld [vmem:[%s3] sm:$0xff]
  %v22 = vld [vmem:[%s3 + $0x8] sm:$0xff]
  %v23 = vld [vmem:[%s3 + $0x10] sm:$0xff]
  %v24 = vld [vmem:[%s3 + $0x18] sm:$0xff]
  %v25 = vld [vmem:[%s3 + $0x20] sm:$0xff]
  %v26 = vld [vmem:[%s3 + $0x28] sm:$0xff]
  %v27 = vld [vmem:[%s3 + $0x30] sm:$0xff]
  %v28 = vld [vmem:[%s3 + $0x38] sm:$0xff]
  %v29 = vld [vmem:[%s3 + $0x40] sm:$0xff]
  %v30 = vld [vmem:[%s3 + $0x48] sm:$0xff]
  %v31 = vld [vmem:[%s3 + $0x50] sm:$0xff]
  %v32 = vld [vmem:[%s3 + $0x58] sm:$0xff]
  %v33 = vld [vmem:[%s3 + $0x60] sm:$0xff]
  %v34 = vld [vmem:[%s3 + $0x68] sm:$0xff]
  %v35 = vlaneseq
  %v36 = vshrl.u32 %v35, 7
  %v37 = vadd.s32 %v36, 8
  %v38 = vlaneseq
  %v39 = vand.u32 %v38, 127
  %v40 = vand.u32 %v36, 7
  %v41 = vand.u32 %v37, 7
  %v42 = vsub.s32 %v36, 1
  %v43 = vsub.s32 %v37, 1
  %vm44 = vcmp.eq.s32.totalorder %v39, %v42
  %vm45 = vcmp.eq.s32.totalorder %v39, %v43
  %vm46 = vcmp.ge.s32.totalorder %v40, 1
  %vm47 = vcmp.ge.s32.totalorder %v41, 1
  %vm48 = vmand %vm44, %vm46
  %vm49 = vmand %vm45, %vm47
  %v50 = vsel %vm48, 1.0, 0.0
  %v51 = vsel %vm49, 1.0, 0.0
  %vm52 = vcmask 130048
  %v54 = vsel %vm52, %v50, 0
  %v57 = vsel %vm52, %v51, 0
  %59 = vmatpush.msra.mxu0 0.0
  %60 = vmatpush.msra.mxu0 0.0
  %61 = vmatpush.msra.mxu0 0.0
  %62 = vmatpush.msra.mxu0 0.0
  %63 = vmatpush.msra.mxu0 0.0
  %64 = vmatpush.msra.mxu0 0.0
  %65 = vmatpush.msra.mxu0 0.0
  %66 = vmatpush.msra.mxu0 0.0
  %67 = vmatpush.msra.mxu0 0.0
  %68 = vmatpush.msra.mxu0 0.0
  %69 = vmatpush.msra.mxu0 0.0
  %70 = vmatpush.msra.mxu0 0.0
  %71 = vmatpush.msra.mxu0 0.0
  %72 = vmatpush.msra.mxu0 0.0
  %73 = vmatpush.msra.mxu0 %v18
  %74 = vmatpush.msra.mxu0 %v17
  %75 = vmatmul.f32.gmra.mxu0 %v54
  %v76 = vpop.f32.mrf.mxu0
  %v77 = vadd.f32 0.0, %v76
  %78 = vmatmul.f32.gmra.mxu0 %v57
  %v79 = vpop.f32.mrf.mxu0
  %v80 = vadd.f32 0.0, %v79
  %81 = vdwg.mxu0
  %v82 = vsub.s32 %v36, 2
  %v83 = vsub.s32 %v37, 2
  %vm84 = vcmp.eq.s32.totalorder %v39, %v82
  %vm85 = vcmp.eq.s32.totalorder %v39, %v83
  %vm86 = vcmp.ge.s32.totalorder %v40, 2
  %vm87 = vcmp.ge.s32.totalorder %v41, 2
  %vm88 = vmand %vm84, %vm86
  %vm89 = vmand %vm85, %vm87
  %v90 = vsel %vm88, 1.0, 0.0
  %v91 = vsel %vm89, 1.0, 0.0
  %v93 = vsel %vm52, %v90, 0
  %v96 = vsel %vm52, %v91, 0
  %98 = vmatpush.msra.mxu0 0.0
  %99 = vmatpush.msra.mxu0 0.0
  %100 = vmatpush.msra.mxu0 0.0
  %101 = vmatpush.msra.mxu0 0.0
  %102 = vmatpush.msra.mxu0 0.0
  %103 = vmatpush.msra.mxu0 0.0
  %104 = vmatpush.msra.mxu0 0.0
  %105 = vmatpush.msra.mxu0 0.0
  %106 = vmatpush.msra.mxu0 0.0
  %107 = vmatpush.msra.mxu0 0.0
  %108 = vmatpush.msra.mxu0 0.0
  %109 = vmatpush.msra.mxu0 0.0
  %110 = vmatpush.msra.mxu0 0.0
  %111 = vmatpush.msra.mxu0 0.0
  %112 = vmatpush.msra.mxu0 %v18
  %113 = vmatpush.msra.mxu0 %v17
  %114 = vmatmul.f32.gmra.mxu0 %v93
  %v115 = vpop.f32.mrf.mxu0
  %v116 = vadd.f32 0.0, %v115
  %117 = vmatmul.f32.gmra.mxu0 %v96
  %v118 = vpop.f32.mrf.mxu0
  %v119 = vadd.f32 0.0, %v118
  %120 = vdwg.mxu0
  %v121 = vsub.s32 %v36, 3
  %v122 = vsub.s32 %v37, 3
  %vm123 = vcmp.eq.s32.totalorder %v39, %v121
  %vm124 = vcmp.eq.s32.totalorder %v39, %v122
  %vm125 = vcmp.ge.s32.totalorder %v40, 3
  %vm126 = vcmp.ge.s32.totalorder %v41, 3
  %vm127 = vmand %vm123, %vm125
  %vm128 = vmand %vm124, %vm126
  %v129 = vsel %vm127, 1.0, 0.0
  %v130 = vsel %vm128, 1.0, 0.0
  %v132 = vsel %vm52, %v129, 0
  %v135 = vsel %vm52, %v130, 0
  %137 = vmatpush.msra.mxu0 0.0
  %138 = vmatpush.msra.mxu0 0.0
  %139 = vmatpush.msra.mxu0 0.0
  %140 = vmatpush.msra.mxu0 0.0
  %141 = vmatpush.msra.mxu0 0.0
  %142 = vmatpush.msra.mxu0 0.0
  %143 = vmatpush.msra.mxu0 0.0
  %144 = vmatpush.msra.mxu0 0.0
  %145 = vmatpush.msra.mxu0 0.0
  %146 = vmatpush.msra.mxu0 0.0
  %147 = vmatpush.msra.mxu0 0.0
  %148 = vmatpush.msra.mxu0 0.0
  %149 = vmatpush.msra.mxu0 0.0
  %150 = vmatpush.msra.mxu0 0.0
  %151 = vmatpush.msra.mxu0 %v18
  %152 = vmatpush.msra.mxu0 %v17
  %153 = vmatmul.f32.gmra.mxu0 %v132
  %v154 = vpop.f32.mrf.mxu0
  %v155 = vadd.f32 0.0, %v154
  %156 = vmatmul.f32.gmra.mxu0 %v135
  %v157 = vpop.f32.mrf.mxu0
  %v158 = vadd.f32 0.0, %v157
  %159 = vdwg.mxu0
  %162 = vrot.lane.b32.xlu0 %v77, 32
  %v163 = vpop.permute.xlu0 %162
  %164 = vrot.lane.b32.xlu0 %v80, 32
  %v165 = vpop.permute.xlu0 %164
  %170 = vrot.lane.b32.xlu0 %v116, 64
  %v171 = vpop.permute.xlu0 %170
  %172 = vrot.lane.b32.xlu0 %v119, 64
  %v173 = vpop.permute.xlu0 %172
  %178 = vrot.lane.b32.xlu0 %v155, 96
  %v179 = vpop.permute.xlu0 %178
  %180 = vrot.lane.b32.xlu0 %v158, 96
  %v181 = vpop.permute.xlu0 %180
  %vm184 = vcmask 261120
  %v185 = vsel %vm184, %v17, %v163
  %v186 = vsel %vm184, %v18, %v165
  %vm187 = vcmask 523264
  %v188 = vsel %vm187, %v185, %v171
  %v189 = vsel %vm187, %v186, %v173
  %vm190 = vcmask 785408
  %v191 = vsel %vm190, %v188, %v179
  %v192 = vsel %vm190, %v189, %v181
  %v193 = vld [vmem:[%s2] sm:$0xff]
  %v194 = vld [vmem:[%s2 + $0x8] sm:$0xff]
  %v195 = vld [vmem:[%s2 + $0x10] sm:$0xff]
  %v196 = vld [vmem:[%s2 + $0x18] sm:$0xff]
  %v197 = vld [vmem:[%s2 + $0x20] sm:$0xff]
  %v198 = vld [vmem:[%s2 + $0x28] sm:$0xff]
  %v199 = vld [vmem:[%s2 + $0x30] sm:$0xff]
  %v200 = vld [vmem:[%s2 + $0x38] sm:$0xff]
  %v201 = vld [vmem:[%s2 + $0x40] sm:$0xff]
  %v202 = vld [vmem:[%s2 + $0x48] sm:$0xff]
  %v203 = vld [vmem:[%s2 + $0x50] sm:$0xff]
  %v204 = vld [vmem:[%s2 + $0x58] sm:$0xff]
  %v205 = vld [vmem:[%s2 + $0x60] sm:$0xff]
  %v206 = vld [vmem:[%s2 + $0x68] sm:$0xff]
  %v207 = vld [vmem:[%s2 + $0x70] sm:$0xff]
  %v208 = vld [vmem:[%s2 + $0x78] sm:$0xff]
  %v209 = vld [vmem:[%s2 + $0x80] sm:$0xff]
  %v210 = vld [vmem:[%s2 + $0x88] sm:$0xff]
  %v211 = vld [vmem:[%s2 + $0x90] sm:$0xff]
  %v212 = vld [vmem:[%s2 + $0x98] sm:$0xff]
  %v213 = vld [vmem:[%s2 + $0xa0] sm:$0xff]
  %v214 = vld [vmem:[%s2 + $0xa8] sm:$0xff]
  %v215 = vld [vmem:[%s2 + $0xb0] sm:$0xff]
  %v216 = vld [vmem:[%s2 + $0xb8] sm:$0xff]
  %v217 = vld [vmem:[%s2 + $0xc0] sm:$0xff]
  %v218 = vld [vmem:[%s2 + $0xc8] sm:$0xff]
  %v219 = vld [vmem:[%s2 + $0xd0] sm:$0xff]
  %v220 = vld [vmem:[%s2 + $0xd8] sm:$0xff]
  %v221 = vld [vmem:[%s2 + $0xe0] sm:$0xff]
  %v222 = vld [vmem:[%s2 + $0xe8] sm:$0xff]
  %v223 = vld [vmem:[%s2 + $0xf0] sm:$0xff]
  %v224 = vld [vmem:[%s2 + $0xf8] sm:$0xff]
  %225 = vmatpush.msra.mxu0 %v223
  %226 = vmatpush.msra.mxu0 %v221
  %227 = vmatpush.msra.mxu0 %v219
  %228 = vmatpush.msra.mxu0 %v217
  %229 = vmatpush.msra.mxu0 %v215
  %230 = vmatpush.msra.mxu0 %v213
  %231 = vmatpush.msra.mxu0 %v211
  %232 = vmatpush.msra.mxu0 %v209
  %233 = vmatpush.msra.mxu0 %v207
  %234 = vmatpush.msra.mxu0 %v205
  %235 = vmatpush.msra.mxu0 %v203
  %236 = vmatpush.msra.mxu0 %v201
  %237 = vmatpush.msra.mxu0 %v199
  %238 = vmatpush.msra.mxu0 %v197
  %239 = vmatpush.msra.mxu0 %v195
  %240 = vmatpush.msra.mxu0 %v193
  %241 = vmatmul.f32.gmra.mxu0 %v191
  %v242 = vpop.f32.mrf.mxu0
  %v243 = vadd.f32 0.0, %v242
  %244 = vmatmul.f32.gmra.mxu0 %v192
  %v245 = vpop.f32.mrf.mxu0
  %v246 = vadd.f32 0.0, %v245
  %247 = vdwg.mxu0
  %248 = vmatpush.msra.mxu0 %v224
  %249 = vmatpush.msra.mxu0 %v222
  %250 = vmatpush.msra.mxu0 %v220
  %251 = vmatpush.msra.mxu0 %v218
  %252 = vmatpush.msra.mxu0 %v216
  %253 = vmatpush.msra.mxu0 %v214
  %254 = vmatpush.msra.mxu0 %v212
  %255 = vmatpush.msra.mxu0 %v210
  %256 = vmatpush.msra.mxu0 %v208
  %257 = vmatpush.msra.mxu0 %v206
  %258 = vmatpush.msra.mxu0 %v204
  %259 = vmatpush.msra.mxu0 %v202
  %260 = vmatpush.msra.mxu0 %v200
  %261 = vmatpush.msra.mxu0 %v198
  %262 = vmatpush.msra.mxu0 %v196
  %263 = vmatpush.msra.mxu0 %v194
  %264 = vmatmul.f32.gmra.mxu0 %v191
  %v265 = vpop.f32.mrf.mxu0
  %v266 = vadd.f32 0.0, %v265
  %267 = vmatmul.f32.gmra.mxu0 %v192
  %v268 = vpop.f32.mrf.mxu0
  %v269 = vadd.f32 0.0, %v268
  %270 = vdwg.mxu0
  %v271 = vperm.slane %v34, 4
  %v272 = vadd.f32 %v243, %v271
  %v273 = vadd.f32 %v246, %v271
  %v274 = vperm.slane %v34, 5
  %276 = vrot.lane.b32.xlu0 %v274, 32
  %v277 = vpop.permute.xlu0 %276
  %v279 = vadd.f32 %v243, %v277
  %v280 = vadd.f32 %v246, %v277
  %v281 = vperm.slane %v34, 6
  %283 = vrot.lane.b32.xlu0 %v281, 64
  %v284 = vpop.permute.xlu0 %283
  %v286 = vadd.f32 %v243, %v284
  %v287 = vadd.f32 %v246, %v284
  %v288 = vperm.slane %v34, 7
  %v289 = vadd.f32 %v266, %v288
  %v290 = vadd.f32 %v269, %v288
  %v291 = vmul.f32 %v289, 0.5
  %v292 = vmul.f32 %v290, 0.5
  %v293 = vmul.f32 %v289, 0.70710677
  %v294 = vmul.f32 %v290, 0.70710677
  %vm295 = vcmp.ge.f32.partialorder %v293, 0.0
  %vm296 = vcmp.ge.f32.partialorder %v294, 0.0
  %v297 = vsel %vm295, 1.0, -1.0
  %v298 = vsel %vm296, 1.0, -1.0
  %v299 = vand.u32 2147483647, %v293
  %v300 = vand.u32 2147483647, %v294
  %v301 = vmul.f32 %v299, 0.3275911
  %v302 = vmul.f32 %v300, 0.3275911
  %v303 = vadd.f32 %v301, 1.0
  %v304 = vadd.f32 %v302, 1.0
  %v305 = vrcp.pop %v303
  %v306 = vmul.f32 %v303, %v305
  %v307 = vsub.f32 1.0, %v306
  %v308 = vmul.f32 %v305, %v307
  %v309 = vadd.f32 %v305, %v308
  %vm310 = vweird.f32 %v303
  %vm311 = vweird.f32 %v305
  %vm312 = vmor %vm310, %vm311
  %v313 = vsel %vm312, %v305, %v309
  %v314 = vand.u32 2147483647, %v303
  %vm315 = vcmp.eq.f32.partialorder %v314, 8.507059e+37
  %v316 = vand.u32 %v303, 2147483648
  %v317 = vor.u32 1.1754944e-38, %v316
  %v318 = vsel %vm315, %v317, %v313
  %v319 = vmul.f32 1.0, %v318
  %v320 = vrcp.pop %v304
  %v321 = vmul.f32 %v304, %v320
  %v322 = vsub.f32 1.0, %v321
  %v323 = vmul.f32 %v320, %v322
  %v324 = vadd.f32 %v320, %v323
  %vm325 = vweird.f32 %v304
  %vm326 = vweird.f32 %v320
  %vm327 = vmor %vm325, %vm326
  %v328 = vsel %vm327, %v320, %v324
  %v329 = vand.u32 2147483647, %v304
  %vm330 = vcmp.eq.f32.partialorder %v329, 8.507059e+37
  %v331 = vand.u32 %v304, 2147483648
  %v332 = vor.u32 1.1754944e-38, %v331
  %v333 = vsel %vm330, %v332, %v328
  %v334 = vmul.f32 1.0, %v333
  %v335 = vmul.f32 %v319, 1.0614054
  %v336 = vmul.f32 %v334, 1.0614054
  %v337 = vadd.f32 %v335, -1.4531521
  %v338 = vadd.f32 %v336, -1.4531521
  %v339 = vmul.f32 %v337, %v319
  %v340 = vmul.f32 %v338, %v334
  %v341 = vadd.f32 %v339, 1.4214138
  %v342 = vadd.f32 %v340, 1.4214138
  %v343 = vmul.f32 %v341, %v319
  %v344 = vmul.f32 %v342, %v334
  %v345 = vadd.f32 %v343, -0.28449672
  %v346 = vadd.f32 %v344, -0.28449672
  %v347 = vmul.f32 %v345, %v319
  %v348 = vmul.f32 %v346, %v334
  %v349 = vadd.f32 %v347, 0.2548296
  %v350 = vadd.f32 %v348, 0.2548296
  %v351 = vmul.f32 %v349, %v319
  %v352 = vmul.f32 %v350, %v334
  %v353 = vsub.f32 0.0, %v299
  %v354 = vsub.f32 0.0, %v300
  %v355 = vmul.f32 %v353, %v299
  %v356 = vmul.f32 %v354, %v300
  %v357 = vmul.f32 %v355, 1.442695
  %v358 = vpow.pop %v357
  %v359 = vmul.f32 %v356, 1.442695
  %v360 = vpow.pop %v359
  %v361 = vmul.f32 %v351, %v358
  %v362 = vmul.f32 %v352, %v360
  %v363 = vsub.f32 1.0, %v361
  %v364 = vsub.f32 1.0, %v362
  %v365 = vmul.f32 %v297, %v363
  %v366 = vmul.f32 %v298, %v364
  %v367 = vadd.f32 %v365, 1.0
  %v368 = vadd.f32 %v366, 1.0
  %v369 = vmul.f32 %v291, %v367
  %v370 = vmul.f32 %v292, %v368
  %372 = vrot.lane.b32.xlu0 %v279, 96
  %v373 = vpop.permute.xlu0 %372
  %vm374 = vcmask 64512
  %v376 = vsel %vm374, %v272, 0
  %v378 = vsel %vm374, %v373, 0
  %380 = vmatpush.xpose.msra.mxu0 0.0
  %381 = vmatpush.xpose.msra.mxu0 0.0
  %382 = vmatpush.xpose.msra.mxu0 0.0
  %383 = vmatpush.xpose.msra.mxu0 0.0
  %384 = vmatpush.xpose.msra.mxu0 0.0
  %385 = vmatpush.xpose.msra.mxu0 0.0
  %386 = vmatpush.xpose.msra.mxu0 0.0
  %387 = vmatpush.xpose.msra.mxu0 0.0
  %388 = vmatpush.xpose.msra.mxu0 0.0
  %389 = vmatpush.xpose.msra.mxu0 0.0
  %390 = vmatpush.xpose.msra.mxu0 0.0
  %391 = vmatpush.xpose.msra.mxu0 0.0
  %392 = vmatpush.xpose.msra.mxu0 0.0
  %393 = vmatpush.xpose.msra.mxu0 0.0
  %394 = vmatpush.xpose.msra.mxu0 0.0
  %395 = vmatpush.xpose.msra.mxu0 %v378
  %396 = vmatmul.f32.gmra.mxu0 %v376
  %v397 = vpop.f32.mrf.mxu0
  %v398 = vadd.f32 0.0, %v397
  %399 = vdwg.mxu0
  %v400 = vmul.f32 %v398, 0.35355338
  %401 = vrot.lane.b32.xlu0 %v272, 120
  %v402 = vpop.permute.xlu0 %401
  %403 = vrot.lane.b32.xlu0 %v279, 88
  %v404 = vpop.permute.xlu0 %403
  %v405 = vsel %vm374, %v402, 0
  %v407 = vsel %vm374, %v404, 0
  %409 = vmatpush.xpose.msra.mxu0 0.0
  %410 = vmatpush.xpose.msra.mxu0 0.0
  %411 = vmatpush.xpose.msra.mxu0 0.0
  %412 = vmatpush.xpose.msra.mxu0 0.0
  %413 = vmatpush.xpose.msra.mxu0 0.0
  %414 = vmatpush.xpose.msra.mxu0 0.0
  %415 = vmatpush.xpose.msra.mxu0 0.0
  %416 = vmatpush.xpose.msra.mxu0 0.0
  %417 = vmatpush.xpose.msra.mxu0 0.0
  %418 = vmatpush.xpose.msra.mxu0 0.0
  %419 = vmatpush.xpose.msra.mxu0 0.0
  %420 = vmatpush.xpose.msra.mxu0 0.0
  %421 = vmatpush.xpose.msra.mxu0 0.0
  %422 = vmatpush.xpose.msra.mxu0 0.0
  %423 = vmatpush.xpose.msra.mxu0 0.0
  %424 = vmatpush.xpose.msra.mxu0 %v407
  %425 = vmatmul.f32.gmra.mxu0 %v405
  %v426 = vpop.f32.mrf.mxu0
  %v427 = vadd.f32 0.0, %v426
  %428 = vdwg.mxu0
  %v429 = vmul.f32 %v427, 0.35355338
  %430 = vrot.lane.b32.xlu0 %v272, 112
  %v431 = vpop.permute.xlu0 %430
  %432 = vrot.lane.b32.xlu0 %v279, 80
  %v433 = vpop.permute.xlu0 %432
  %v434 = vsel %vm374, %v431, 0
  %v436 = vsel %vm374, %v433, 0
  %438 = vmatpush.xpose.msra.mxu0 0.0
  %439 = vmatpush.xpose.msra.mxu0 0.0
  %440 = vmatpush.xpose.msra.mxu0 0.0
  %441 = vmatpush.xpose.msra.mxu0 0.0
  %442 = vmatpush.xpose.msra.mxu0 0.0
  %443 = vmatpush.xpose.msra.mxu0 0.0
  %444 = vmatpush.xpose.msra.mxu0 0.0
  %445 = vmatpush.xpose.msra.mxu0 0.0
  %446 = vmatpush.xpose.msra.mxu0 0.0
  %447 = vmatpush.xpose.msra.mxu0 0.0
  %448 = vmatpush.xpose.msra.mxu0 0.0
  %449 = vmatpush.xpose.msra.mxu0 0.0
  %450 = vmatpush.xpose.msra.mxu0 0.0
  %451 = vmatpush.xpose.msra.mxu0 0.0
  %452 = vmatpush.xpose.msra.mxu0 0.0
  %453 = vmatpush.xpose.msra.mxu0 %v436
  %454 = vmatmul.f32.gmra.mxu0 %v434
  %v455 = vpop.f32.mrf.mxu0
  %v456 = vadd.f32 0.0, %v455
  %457 = vdwg.mxu0
  %v458 = vmul.f32 %v456, 0.35355338
  %459 = vrot.lane.b32.xlu0 %v272, 104
  %v460 = vpop.permute.xlu0 %459
  %461 = vrot.lane.b32.xlu0 %v279, 72
  %v462 = vpop.permute.xlu0 %461
  %v463 = vsel %vm374, %v460, 0
  %v465 = vsel %vm374, %v462, 0
  %467 = vmatpush.xpose.msra.mxu0 0.0
  %468 = vmatpush.xpose.msra.mxu0 0.0
  %469 = vmatpush.xpose.msra.mxu0 0.0
  %470 = vmatpush.xpose.msra.mxu0 0.0
  %471 = vmatpush.xpose.msra.mxu0 0.0
  %472 = vmatpush.xpose.msra.mxu0 0.0
  %473 = vmatpush.xpose.msra.mxu0 0.0
  %474 = vmatpush.xpose.msra.mxu0 0.0
  %475 = vmatpush.xpose.msra.mxu0 0.0
  %476 = vmatpush.xpose.msra.mxu0 0.0
  %477 = vmatpush.xpose.msra.mxu0 0.0
  %478 = vmatpush.xpose.msra.mxu0 0.0
  %479 = vmatpush.xpose.msra.mxu0 0.0
  %480 = vmatpush.xpose.msra.mxu0 0.0
  %481 = vmatpush.xpose.msra.mxu0 0.0
  %482 = vmatpush.xpose.msra.mxu0 %v465
  %483 = vmatmul.f32.gmra.mxu0 %v463
  %v484 = vpop.f32.mrf.mxu0
  %v485 = vadd.f32 0.0, %v484
  %486 = vdwg.mxu0
  %v487 = vmul.f32 %v485, 0.35355338
  %489 = vrot.lane.b32.xlu0 %v280, 96
  %v490 = vpop.permute.xlu0 %489
  %v492 = vsel %vm374, %v273, 0
  %v494 = vsel %vm374, %v490, 0
  %496 = vmatpush.xpose.msra.mxu0 0.0
  %497 = vmatpush.xpose.msra.mxu0 0.0
  %498 = vmatpush.xpose.msra.mxu0 0.0
  %499 = vmatpush.xpose.msra.mxu0 0.0
  %500 = vmatpush.xpose.msra.mxu0 0.0
  %501 = vmatpush.xpose.msra.mxu0 0.0
  %502 = vmatpush.xpose.msra.mxu0 0.0
  %503 = vmatpush.xpose.msra.mxu0 0.0
  %504 = vmatpush.xpose.msra.mxu0 0.0
  %505 = vmatpush.xpose.msra.mxu0 0.0
  %506 = vmatpush.xpose.msra.mxu0 0.0
  %507 = vmatpush.xpose.msra.mxu0 0.0
  %508 = vmatpush.xpose.msra.mxu0 0.0
  %509 = vmatpush.xpose.msra.mxu0 0.0
  %510 = vmatpush.xpose.msra.mxu0 0.0
  %511 = vmatpush.xpose.msra.mxu0 %v494
  %512 = vmatmul.f32.gmra.mxu0 %v492
  %v513 = vpop.f32.mrf.mxu0
  %v514 = vadd.f32 0.0, %v513
  %515 = vdwg.mxu0
  %v516 = vmul.f32 %v514, 0.35355338
  %517 = vrot.lane.b32.xlu0 %v273, 120
  %v518 = vpop.permute.xlu0 %517
  %519 = vrot.lane.b32.xlu0 %v280, 88
  %v520 = vpop.permute.xlu0 %519
  %v521 = vsel %vm374, %v518, 0
  %v523 = vsel %vm374, %v520, 0
  %525 = vmatpush.xpose.msra.mxu0 0.0
  %526 = vmatpush.xpose.msra.mxu0 0.0
  %527 = vmatpush.xpose.msra.mxu0 0.0
  %528 = vmatpush.xpose.msra.mxu0 0.0
  %529 = vmatpush.xpose.msra.mxu0 0.0
  %530 = vmatpush.xpose.msra.mxu0 0.0
  %531 = vmatpush.xpose.msra.mxu0 0.0
  %532 = vmatpush.xpose.msra.mxu0 0.0
  %533 = vmatpush.xpose.msra.mxu0 0.0
  %534 = vmatpush.xpose.msra.mxu0 0.0
  %535 = vmatpush.xpose.msra.mxu0 0.0
  %536 = vmatpush.xpose.msra.mxu0 0.0
  %537 = vmatpush.xpose.msra.mxu0 0.0
  %538 = vmatpush.xpose.msra.mxu0 0.0
  %539 = vmatpush.xpose.msra.mxu0 0.0
  %540 = vmatpush.xpose.msra.mxu0 %v523
  %541 = vmatmul.f32.gmra.mxu0 %v521
  %v542 = vpop.f32.mrf.mxu0
  %v543 = vadd.f32 0.0, %v542
  %544 = vdwg.mxu0
  %v545 = vmul.f32 %v543, 0.35355338
  %546 = vrot.lane.b32.xlu0 %v273, 112
  %v547 = vpop.permute.xlu0 %546
  %548 = vrot.lane.b32.xlu0 %v280, 80
  %v549 = vpop.permute.xlu0 %548
  %v550 = vsel %vm374, %v547, 0
  %v552 = vsel %vm374, %v549, 0
  %554 = vmatpush.xpose.msra.mxu0 0.0
  %555 = vmatpush.xpose.msra.mxu0 0.0
  %556 = vmatpush.xpose.msra.mxu0 0.0
  %557 = vmatpush.xpose.msra.mxu0 0.0
  %558 = vmatpush.xpose.msra.mxu0 0.0
  %559 = vmatpush.xpose.msra.mxu0 0.0
  %560 = vmatpush.xpose.msra.mxu0 0.0
  %561 = vmatpush.xpose.msra.mxu0 0.0
  %562 = vmatpush.xpose.msra.mxu0 0.0
  %563 = vmatpush.xpose.msra.mxu0 0.0
  %564 = vmatpush.xpose.msra.mxu0 0.0
  %565 = vmatpush.xpose.msra.mxu0 0.0
  %566 = vmatpush.xpose.msra.mxu0 0.0
  %567 = vmatpush.xpose.msra.mxu0 0.0
  %568 = vmatpush.xpose.msra.mxu0 0.0
  %569 = vmatpush.xpose.msra.mxu0 %v552
  %570 = vmatmul.f32.gmra.mxu0 %v550
  %v571 = vpop.f32.mrf.mxu0
  %v572 = vadd.f32 0.0, %v571
  %573 = vdwg.mxu0
  %v574 = vmul.f32 %v572, 0.35355338
  %575 = vrot.lane.b32.xlu0 %v273, 104
  %v576 = vpop.permute.xlu0 %575
  %577 = vrot.lane.b32.xlu0 %v280, 72
  %v578 = vpop.permute.xlu0 %577
  %v579 = vsel %vm374, %v576, 0
  %v581 = vsel %vm374, %v578, 0
  %583 = vmatpush.xpose.msra.mxu0 0.0
  %584 = vmatpush.xpose.msra.mxu0 0.0
  %585 = vmatpush.xpose.msra.mxu0 0.0
  %586 = vmatpush.xpose.msra.mxu0 0.0
  %587 = vmatpush.xpose.msra.mxu0 0.0
  %588 = vmatpush.xpose.msra.mxu0 0.0
  %589 = vmatpush.xpose.msra.mxu0 0.0
  %590 = vmatpush.xpose.msra.mxu0 0.0
  %591 = vmatpush.xpose.msra.mxu0 0.0
  %592 = vmatpush.xpose.msra.mxu0 0.0
  %593 = vmatpush.xpose.msra.mxu0 0.0
  %594 = vmatpush.xpose.msra.mxu0 0.0
  %595 = vmatpush.xpose.msra.mxu0 0.0
  %596 = vmatpush.xpose.msra.mxu0 0.0
  %597 = vmatpush.xpose.msra.mxu0 0.0
  %598 = vmatpush.xpose.msra.mxu0 %v581
  %599 = vmatmul.f32.gmra.mxu0 %v579
  %v600 = vpop.f32.mrf.mxu0
  %v601 = vadd.f32 0.0, %v600
  %602 = vdwg.mxu0
  %v603 = vmul.f32 %v601, 0.35355338
  %v604 = vsel %vm374, %v400, -inf
  %605 = vmax.xlane.f32.xlu0 %v604
  %v606 = vpop.xlane.xlu0 %605
  %v607 = vsel %vm374, %v429, -inf
  %608 = vmax.xlane.f32.xlu0 %v607
  %v609 = vpop.xlane.xlu0 %608
  %v610 = vsel %vm374, %v458, -inf
  %611 = vmax.xlane.f32.xlu0 %v610
  %v612 = vpop.xlane.xlu0 %611
  %v613 = vsel %vm374, %v487, -inf
  %614 = vmax.xlane.f32.xlu0 %v613
  %v615 = vpop.xlane.xlu0 %614
  %v616 = vsel %vm374, %v516, -inf
  %617 = vmax.xlane.f32.xlu0 %v616
  %v618 = vpop.xlane.xlu0 %617
  %v619 = vsel %vm374, %v545, -inf
  %620 = vmax.xlane.f32.xlu0 %v619
  %v621 = vpop.xlane.xlu0 %620
  %v622 = vsel %vm374, %v574, -inf
  %623 = vmax.xlane.f32.xlu0 %v622
  %v624 = vpop.xlane.xlu0 %623
  %v625 = vsel %vm374, %v603, -inf
  %626 = vmax.xlane.f32.xlu0 %v625
  %v627 = vpop.xlane.xlu0 %626
  %v628 = vsub.f32 %v400, %v606
  %v629 = vsub.f32 %v429, %v609
  %v630 = vsub.f32 %v458, %v612
  %v631 = vsub.f32 %v487, %v615
  %v632 = vsub.f32 %v516, %v618
  %v633 = vsub.f32 %v545, %v621
  %v634 = vsub.f32 %v574, %v624
  %v635 = vsub.f32 %v603, %v627
  %v636 = vmul.f32 %v628, 1.442695
  %v637 = vpow.pop %v636
  %v638 = vmul.f32 %v629, 1.442695
  %v639 = vpow.pop %v638
  %v640 = vmul.f32 %v630, 1.442695
  %v641 = vpow.pop %v640
  %v642 = vmul.f32 %v631, 1.442695
  %v643 = vpow.pop %v642
  %v644 = vmul.f32 %v632, 1.442695
  %v645 = vpow.pop %v644
  %v646 = vmul.f32 %v633, 1.442695
  %v647 = vpow.pop %v646
  %v648 = vmul.f32 %v634, 1.442695
  %v649 = vpow.pop %v648
  %v650 = vmul.f32 %v635, 1.442695
  %v651 = vpow.pop %v650
  %v652 = vsel %vm374, %v637, 0.0
  %653 = vadd.xlane.f32.xlu0 %v652
  %v654 = vpop.xlane.xlu0 %653
  %v655 = vsel %vm374, %v639, 0.0
  %656 = vadd.xlane.f32.xlu0 %v655
  %v657 = vpop.xlane.xlu0 %656
  %v658 = vsel %vm374, %v641, 0.0
  %659 = vadd.xlane.f32.xlu0 %v658
  %v660 = vpop.xlane.xlu0 %659
  %v661 = vsel %vm374, %v643, 0.0
  %662 = vadd.xlane.f32.xlu0 %v661
  %v663 = vpop.xlane.xlu0 %662
  %v664 = vsel %vm374, %v645, 0.0
  %665 = vadd.xlane.f32.xlu0 %v664
  %v666 = vpop.xlane.xlu0 %665
  %v667 = vsel %vm374, %v647, 0.0
  %668 = vadd.xlane.f32.xlu0 %v667
  %v669 = vpop.xlane.xlu0 %668
  %v670 = vsel %vm374, %v649, 0.0
  %671 = vadd.xlane.f32.xlu0 %v670
  %v672 = vpop.xlane.xlu0 %671
  %v673 = vsel %vm374, %v651, 0.0
  %674 = vadd.xlane.f32.xlu0 %v673
  %v675 = vpop.xlane.xlu0 %674
  %v676 = vrcp.pop %v654
  %v677 = vmul.f32 %v654, %v676
  %v678 = vsub.f32 1.0, %v677
  %v679 = vmul.f32 %v676, %v678
  %v680 = vadd.f32 %v676, %v679
  %vm681 = vweird.f32 %v654
  %vm682 = vweird.f32 %v676
  %vm683 = vmor %vm681, %vm682
  %v684 = vsel %vm683, %v676, %v680
  %v685 = vand.u32 2147483647, %v654
  %vm686 = vcmp.eq.f32.partialorder %v685, 8.507059e+37
  %v687 = vand.u32 %v654, 2147483648
  %v688 = vor.u32 1.1754944e-38, %v687
  %v689 = vsel %vm686, %v688, %v684
  %v690 = vrcp.pop %v657
  %v691 = vmul.f32 %v657, %v690
  %v692 = vsub.f32 1.0, %v691
  %v693 = vmul.f32 %v690, %v692
  %v694 = vadd.f32 %v690, %v693
  %vm695 = vweird.f32 %v657
  %vm696 = vweird.f32 %v690
  %vm697 = vmor %vm695, %vm696
  %v698 = vsel %vm697, %v690, %v694
  %v699 = vand.u32 2147483647, %v657
  %vm700 = vcmp.eq.f32.partialorder %v699, 8.507059e+37
  %v701 = vand.u32 %v657, 2147483648
  %v702 = vor.u32 1.1754944e-38, %v701
  %v703 = vsel %vm700, %v702, %v698
  %v704 = vrcp.pop %v660
  %v705 = vmul.f32 %v660, %v704
  %v706 = vsub.f32 1.0, %v705
  %v707 = vmul.f32 %v704, %v706
  %v708 = vadd.f32 %v704, %v707
  %vm709 = vweird.f32 %v660
  %vm710 = vweird.f32 %v704
  %vm711 = vmor %vm709, %vm710
  %v712 = vsel %vm711, %v704, %v708
  %v713 = vand.u32 2147483647, %v660
  %vm714 = vcmp.eq.f32.partialorder %v713, 8.507059e+37
  %v715 = vand.u32 %v660, 2147483648
  %v716 = vor.u32 1.1754944e-38, %v715
  %v717 = vsel %vm714, %v716, %v712
  %v718 = vrcp.pop %v663
  %v719 = vmul.f32 %v663, %v718
  %v720 = vsub.f32 1.0, %v719
  %v721 = vmul.f32 %v718, %v720
  %v722 = vadd.f32 %v718, %v721
  %vm723 = vweird.f32 %v663
  %vm724 = vweird.f32 %v718
  %vm725 = vmor %vm723, %vm724
  %v726 = vsel %vm725, %v718, %v722
  %v727 = vand.u32 2147483647, %v663
  %vm728 = vcmp.eq.f32.partialorder %v727, 8.507059e+37
  %v729 = vand.u32 %v663, 2147483648
  %v730 = vor.u32 1.1754944e-38, %v729
  %v731 = vsel %vm728, %v730, %v726
  %v732 = vrcp.pop %v666
  %v733 = vmul.f32 %v666, %v732
  %v734 = vsub.f32 1.0, %v733
  %v735 = vmul.f32 %v732, %v734
  %v736 = vadd.f32 %v732, %v735
  %vm737 = vweird.f32 %v666
  %vm738 = vweird.f32 %v732
  %vm739 = vmor %vm737, %vm738
  %v740 = vsel %vm739, %v732, %v736
  %v741 = vand.u32 2147483647, %v666
  %vm742 = vcmp.eq.f32.partialorder %v741, 8.507059e+37
  %v743 = vand.u32 %v666, 2147483648
  %v744 = vor.u32 1.1754944e-38, %v743
  %v745 = vsel %vm742, %v744, %v740
  %v746 = vrcp.pop %v669
  %v747 = vmul.f32 %v669, %v746
  %v748 = vsub.f32 1.0, %v747
  %v749 = vmul.f32 %v746, %v748
  %v750 = vadd.f32 %v746, %v749
  %vm751 = vweird.f32 %v669
  %vm752 = vweird.f32 %v746
  %vm753 = vmor %vm751, %vm752
  %v754 = vsel %vm753, %v746, %v750
  %v755 = vand.u32 2147483647, %v669
  %vm756 = vcmp.eq.f32.partialorder %v755, 8.507059e+37
  %v757 = vand.u32 %v669, 2147483648
  %v758 = vor.u32 1.1754944e-38, %v757
  %v759 = vsel %vm756, %v758, %v754
  %v760 = vrcp.pop %v672
  %v761 = vmul.f32 %v672, %v760
  %v762 = vsub.f32 1.0, %v761
  %v763 = vmul.f32 %v760, %v762
  %v764 = vadd.f32 %v760, %v763
  %vm765 = vweird.f32 %v672
  %vm766 = vweird.f32 %v760
  %vm767 = vmor %vm765, %vm766
  %v768 = vsel %vm767, %v760, %v764
  %v769 = vand.u32 2147483647, %v672
  %vm770 = vcmp.eq.f32.partialorder %v769, 8.507059e+37
  %v771 = vand.u32 %v672, 2147483648
  %v772 = vor.u32 1.1754944e-38, %v771
  %v773 = vsel %vm770, %v772, %v768
  %v774 = vrcp.pop %v675
  %v775 = vmul.f32 %v675, %v774
  %v776 = vsub.f32 1.0, %v775
  %v777 = vmul.f32 %v774, %v776
  %v778 = vadd.f32 %v774, %v777
  %vm779 = vweird.f32 %v675
  %vm780 = vweird.f32 %v774
  %vm781 = vmor %vm779, %vm780
  %v782 = vsel %vm781, %v774, %v778
  %v783 = vand.u32 2147483647, %v675
  %vm784 = vcmp.eq.f32.partialorder %v783, 8.507059e+37
  %v785 = vand.u32 %v675, 2147483648
  %v786 = vor.u32 1.1754944e-38, %v785
  %v787 = vsel %vm784, %v786, %v782
  %v788 = vmul.f32 %v637, %v689
  %v789 = vmul.f32 %v639, %v703
  %v790 = vmul.f32 %v641, %v717
  %v791 = vmul.f32 %v643, %v731
  %v792 = vmul.f32 %v645, %v745
  %v793 = vmul.f32 %v647, %v759
  %v794 = vmul.f32 %v649, %v773
  %v795 = vmul.f32 %v651, %v787
  %797 = vrot.lane.b32.xlu0 %v286, 64
  %v798 = vpop.permute.xlu0 %797
  %v801 = vsel %vm374, %v788, 0
  %803 = vmatpush.msra.mxu0 0.0
  %804 = vmatpush.msra.mxu0 0.0
  %805 = vmatpush.msra.mxu0 0.0
  %806 = vmatpush.msra.mxu0 0.0
  %807 = vmatpush.msra.mxu0 0.0
  %808 = vmatpush.msra.mxu0 0.0
  %809 = vmatpush.msra.mxu0 0.0
  %810 = vmatpush.msra.mxu0 0.0
  %811 = vmatpush.msra.mxu0 0.0
  %812 = vmatpush.msra.mxu0 0.0
  %813 = vmatpush.msra.mxu0 0.0
  %814 = vmatpush.msra.mxu0 0.0
  %815 = vmatpush.msra.mxu0 0.0
  %816 = vmatpush.msra.mxu0 0.0
  %817 = vmatpush.msra.mxu0 0.0
  %818 = vmatpush.msra.mxu0 %v798
  %819 = vmatmul.f32.gmra.mxu0 %v801
  %v820 = vpop.f32.mrf.mxu0
  %v821 = vadd.f32 0.0, %v820
  %822 = vdwg.mxu0
  %823 = vrot.lane.b32.xlu0 %v286, 56
  %v824 = vpop.permute.xlu0 %823
  %v827 = vsel %vm374, %v789, 0
  %829 = vmatpush.msra.mxu0 0.0
  %830 = vmatpush.msra.mxu0 0.0
  %831 = vmatpush.msra.mxu0 0.0
  %832 = vmatpush.msra.mxu0 0.0
  %833 = vmatpush.msra.mxu0 0.0
  %834 = vmatpush.msra.mxu0 0.0
  %835 = vmatpush.msra.mxu0 0.0
  %836 = vmatpush.msra.mxu0 0.0
  %837 = vmatpush.msra.mxu0 0.0
  %838 = vmatpush.msra.mxu0 0.0
  %839 = vmatpush.msra.mxu0 0.0
  %840 = vmatpush.msra.mxu0 0.0
  %841 = vmatpush.msra.mxu0 0.0
  %842 = vmatpush.msra.mxu0 0.0
  %843 = vmatpush.msra.mxu0 0.0
  %844 = vmatpush.msra.mxu0 %v824
  %845 = vmatmul.f32.gmra.mxu0 %v827
  %v846 = vpop.f32.mrf.mxu0
  %v847 = vadd.f32 0.0, %v846
  %848 = vdwg.mxu0
  %849 = vrot.lane.b32.xlu0 %v286, 48
  %v850 = vpop.permute.xlu0 %849
  %v853 = vsel %vm374, %v790, 0
  %855 = vmatpush.msra.mxu0 0.0
  %856 = vmatpush.msra.mxu0 0.0
  %857 = vmatpush.msra.mxu0 0.0
  %858 = vmatpush.msra.mxu0 0.0
  %859 = vmatpush.msra.mxu0 0.0
  %860 = vmatpush.msra.mxu0 0.0
  %861 = vmatpush.msra.mxu0 0.0
  %862 = vmatpush.msra.mxu0 0.0
  %863 = vmatpush.msra.mxu0 0.0
  %864 = vmatpush.msra.mxu0 0.0
  %865 = vmatpush.msra.mxu0 0.0
  %866 = vmatpush.msra.mxu0 0.0
  %867 = vmatpush.msra.mxu0 0.0
  %868 = vmatpush.msra.mxu0 0.0
  %869 = vmatpush.msra.mxu0 0.0
  %870 = vmatpush.msra.mxu0 %v850
  %871 = vmatmul.f32.gmra.mxu0 %v853
  %v872 = vpop.f32.mrf.mxu0
  %v873 = vadd.f32 0.0, %v872
  %874 = vdwg.mxu0
  %875 = vrot.lane.b32.xlu0 %v286, 40
  %v876 = vpop.permute.xlu0 %875
  %v879 = vsel %vm374, %v791, 0
  %881 = vmatpush.msra.mxu0 0.0
  %882 = vmatpush.msra.mxu0 0.0
  %883 = vmatpush.msra.mxu0 0.0
  %884 = vmatpush.msra.mxu0 0.0
  %885 = vmatpush.msra.mxu0 0.0
  %886 = vmatpush.msra.mxu0 0.0
  %887 = vmatpush.msra.mxu0 0.0
  %888 = vmatpush.msra.mxu0 0.0
  %889 = vmatpush.msra.mxu0 0.0
  %890 = vmatpush.msra.mxu0 0.0
  %891 = vmatpush.msra.mxu0 0.0
  %892 = vmatpush.msra.mxu0 0.0
  %893 = vmatpush.msra.mxu0 0.0
  %894 = vmatpush.msra.mxu0 0.0
  %895 = vmatpush.msra.mxu0 0.0
  %896 = vmatpush.msra.mxu0 %v876
  %897 = vmatmul.f32.gmra.mxu0 %v879
  %v898 = vpop.f32.mrf.mxu0
  %v899 = vadd.f32 0.0, %v898
  %900 = vdwg.mxu0
  %902 = vrot.lane.b32.xlu0 %v847, 8
  %v903 = vpop.permute.xlu0 %902
  %906 = vrot.lane.b32.xlu0 %v873, 16
  %v907 = vpop.permute.xlu0 %906
  %910 = vrot.lane.b32.xlu0 %v899, 24
  %v911 = vpop.permute.xlu0 %910
  %v913 = vsel %vm374, %v821, %v903
  %v914 = vsel %vm52, %v913, %v907
  %vm915 = vcmask 195584
  %v916 = vsel %vm915, %v914, %v911
  %918 = vrot.lane.b32.xlu0 %v287, 64
  %v919 = vpop.permute.xlu0 %918
  %v922 = vsel %vm374, %v792, 0
  %924 = vmatpush.msra.mxu0 0.0
  %925 = vmatpush.msra.mxu0 0.0
  %926 = vmatpush.msra.mxu0 0.0
  %927 = vmatpush.msra.mxu0 0.0
  %928 = vmatpush.msra.mxu0 0.0
  %929 = vmatpush.msra.mxu0 0.0
  %930 = vmatpush.msra.mxu0 0.0
  %931 = vmatpush.msra.mxu0 0.0
  %932 = vmatpush.msra.mxu0 0.0
  %933 = vmatpush.msra.mxu0 0.0
  %934 = vmatpush.msra.mxu0 0.0
  %935 = vmatpush.msra.mxu0 0.0
  %936 = vmatpush.msra.mxu0 0.0
  %937 = vmatpush.msra.mxu0 0.0
  %938 = vmatpush.msra.mxu0 0.0
  %939 = vmatpush.msra.mxu0 %v919
  %940 = vmatmul.f32.gmra.mxu0 %v922
  %v941 = vpop.f32.mrf.mxu0
  %v942 = vadd.f32 0.0, %v941
  %943 = vdwg.mxu0
  %944 = vrot.lane.b32.xlu0 %v287, 56
  %v945 = vpop.permute.xlu0 %944
  %v948 = vsel %vm374, %v793, 0
  %950 = vmatpush.msra.mxu0 0.0
  %951 = vmatpush.msra.mxu0 0.0
  %952 = vmatpush.msra.mxu0 0.0
  %953 = vmatpush.msra.mxu0 0.0
  %954 = vmatpush.msra.mxu0 0.0
  %955 = vmatpush.msra.mxu0 0.0
  %956 = vmatpush.msra.mxu0 0.0
  %957 = vmatpush.msra.mxu0 0.0
  %958 = vmatpush.msra.mxu0 0.0
  %959 = vmatpush.msra.mxu0 0.0
  %960 = vmatpush.msra.mxu0 0.0
  %961 = vmatpush.msra.mxu0 0.0
  %962 = vmatpush.msra.mxu0 0.0
  %963 = vmatpush.msra.mxu0 0.0
  %964 = vmatpush.msra.mxu0 0.0
  %965 = vmatpush.msra.mxu0 %v945
  %966 = vmatmul.f32.gmra.mxu0 %v948
  %v967 = vpop.f32.mrf.mxu0
  %v968 = vadd.f32 0.0, %v967
  %969 = vdwg.mxu0
  %970 = vrot.lane.b32.xlu0 %v287, 48
  %v971 = vpop.permute.xlu0 %970
  %v974 = vsel %vm374, %v794, 0
  %976 = vmatpush.msra.mxu0 0.0
  %977 = vmatpush.msra.mxu0 0.0
  %978 = vmatpush.msra.mxu0 0.0
  %979 = vmatpush.msra.mxu0 0.0
  %980 = vmatpush.msra.mxu0 0.0
  %981 = vmatpush.msra.mxu0 0.0
  %982 = vmatpush.msra.mxu0 0.0
  %983 = vmatpush.msra.mxu0 0.0
  %984 = vmatpush.msra.mxu0 0.0
  %985 = vmatpush.msra.mxu0 0.0
  %986 = vmatpush.msra.mxu0 0.0
  %987 = vmatpush.msra.mxu0 0.0
  %988 = vmatpush.msra.mxu0 0.0
  %989 = vmatpush.msra.mxu0 0.0
  %990 = vmatpush.msra.mxu0 0.0
  %991 = vmatpush.msra.mxu0 %v971
  %992 = vmatmul.f32.gmra.mxu0 %v974
  %v993 = vpop.f32.mrf.mxu0
  %v994 = vadd.f32 0.0, %v993
  %995 = vdwg.mxu0
  %996 = vrot.lane.b32.xlu0 %v287, 40
  %v997 = vpop.permute.xlu0 %996
  %v1000 = vsel %vm374, %v795, 0
  %1002 = vmatpush.msra.mxu0 0.0
  %1003 = vmatpush.msra.mxu0 0.0
  %1004 = vmatpush.msra.mxu0 0.0
  %1005 = vmatpush.msra.mxu0 0.0
  %1006 = vmatpush.msra.mxu0 0.0
  %1007 = vmatpush.msra.mxu0 0.0
  %1008 = vmatpush.msra.mxu0 0.0
  %1009 = vmatpush.msra.mxu0 0.0
  %1010 = vmatpush.msra.mxu0 0.0
  %1011 = vmatpush.msra.mxu0 0.0
  %1012 = vmatpush.msra.mxu0 0.0
  %1013 = vmatpush.msra.mxu0 0.0
  %1014 = vmatpush.msra.mxu0 0.0
  %1015 = vmatpush.msra.mxu0 0.0
  %1016 = vmatpush.msra.mxu0 0.0
  %1017 = vmatpush.msra.mxu0 %v997
  %1018 = vmatmul.f32.gmra.mxu0 %v1000
  %v1019 = vpop.f32.mrf.mxu0
  %v1020 = vadd.f32 0.0, %v1019
  %1021 = vdwg.mxu0
  %1023 = vrot.lane.b32.xlu0 %v968, 8
  %v1024 = vpop.permute.xlu0 %1023
  %1027 = vrot.lane.b32.xlu0 %v994, 16
  %v1028 = vpop.permute.xlu0 %1027
  %1031 = vrot.lane.b32.xlu0 %v1020, 24
  %v1032 = vpop.permute.xlu0 %1031
  %v1034 = vsel %vm374, %v942, %v1024
  %v1035 = vsel %vm52, %v1034, %v1028
  %v1036 = vsel %vm915, %v1035, %v1032
  %v1037 = vperm.slane %v33, 0
  %v1039 = vsel %vm184, %v916, 0
  %v1042 = vsel %vm184, %v1036, 0
  %1044 = vmatpush.msra.mxu0 0.0
  %1045 = vmatpush.msra.mxu0 0.0
  %1046 = vmatpush.msra.mxu0 0.0
  %1047 = vmatpush.msra.mxu0 0.0
  %1048 = vmatpush.msra.mxu0 0.0
  %1049 = vmatpush.msra.mxu0 0.0
  %1050 = vmatpush.msra.mxu0 0.0
  %1051 = vmatpush.msra.mxu0 0.0
  %1052 = vmatpush.msra.mxu0 0.0
  %1053 = vmatpush.msra.mxu0 0.0
  %1054 = vmatpush.msra.mxu0 0.0
  %1055 = vmatpush.msra.mxu0 0.0
  %1056 = vmatpush.msra.mxu0 %v24
  %1057 = vmatpush.msra.mxu0 %v23
  %1058 = vmatpush.msra.mxu0 %v22
  %1059 = vmatpush.msra.mxu0 %v21
  %1060 = vmatmul.f32.gmra.mxu0 %v1039
  %v1061 = vpop.f32.mrf.mxu0
  %v1062 = vadd.f32 %v1037, %v1061
  %1063 = vmatmul.f32.gmra.mxu0 %v1042
  %v1064 = vpop.f32.mrf.mxu0
  %v1065 = vadd.f32 %v1037, %v1064
  %1066 = vdwg.mxu0
  %v1067 = vadd.f32 %v1062, %v369
  %v1068 = vadd.f32 %v1065, %v370
  %1071 = vrot.lane.b32.xlu0 %v243, 32
  %v1072 = vpop.permute.xlu0 %1071
  %1073 = vrot.lane.b32.xlu0 %v246, 32
  %v1074 = vpop.permute.xlu0 %1073
  %v1077 = vadd.f32 %v1067, %v1072
  %v1078 = vadd.f32 %v1068, %v1074
  %v1079 = vsel %vm184, %v1077, 0.0
  %1080 = vadd.xlane.f32.xlu0 %v1079
  %v1081 = vpop.xlane.xlu0 %1080
  %v1082 = vsel %vm184, %v1078, 0.0
  %1083 = vadd.xlane.f32.xlu0 %v1082
  %v1084 = vpop.xlane.xlu0 %1083
  %v1085 = vrcp.pop 32.0
  %v1086 = vmul.f32 32.0, %v1085
  %v1087 = vsub.f32 1.0, %v1086
  %v1088 = vmul.f32 %v1085, %v1087
  %v1089 = vadd.f32 %v1085, %v1088
  %vm1090 = vweird.f32 %v1085
  %v1091 = vsel %vm1090, %v1085, %v1089
  %v1092 = vmul.f32 %v1081, %v1091
  %v1093 = vmul.f32 %v1084, %v1091
  %v1094 = vsub.f32 %v1077, %v1092
  %v1095 = vsub.f32 %v1078, %v1093
  %v1096 = vmul.f32 %v1094, %v1094
  %v1097 = vmul.f32 %v1095, %v1095
  %v1098 = vsel %vm184, %v1096, 0.0
  %1099 = vadd.xlane.f32.xlu0 %v1098
  %v1100 = vpop.xlane.xlu0 %1099
  %v1101 = vsel %vm184, %v1097, 0.0
  %1102 = vadd.xlane.f32.xlu0 %v1101
  %v1103 = vpop.xlane.xlu0 %1102
  %v1104 = vmul.f32 %v1100, %v1091
  %v1105 = vmul.f32 %v1103, %v1091
  %v1106 = vadd.f32 %v1104, 1e-05
  %v1107 = vadd.f32 %v1105, 1e-05
  %v1108 = vrsqrt.pop %v1106
  %v1109 = vmul.f32 %v1108, %v1106
  %v1110 = vmul.f32 %v1109, %v1108
  %v1111 = vmul.f32 0.5, %v1110
  %v1112 = vsub.f32 1.5, %v1111
  %v1113 = vmul.f32 %v1108, %v1112
  %vm1114 = vweird.f32 %v1106
  %vm1115 = vweird.f32 %v1108
  %vm1116 = vmor %vm1114, %vm1115
  %v1117 = vsel %vm1116, %v1108, %v1113
  %v1118 = vrsqrt.pop %v1107
  %v1119 = vmul.f32 %v1118, %v1107
  %v1120 = vmul.f32 %v1119, %v1118
  %v1121 = vmul.f32 0.5, %v1120
  %v1122 = vsub.f32 1.5, %v1121
  %v1123 = vmul.f32 %v1118, %v1122
  %vm1124 = vweird.f32 %v1107
  %vm1125 = vweird.f32 %v1118
  %vm1126 = vmor %vm1124, %vm1125
  %v1127 = vsel %vm1126, %v1118, %v1123
  %v1128 = vmul.f32 %v1094, %v1117
  %v1129 = vmul.f32 %v1095, %v1127
  %v1130 = vperm.slane %v34, 0
  %v1131 = vmul.f32 %v1128, %v1130
  %v1132 = vmul.f32 %v1129, %v1130
  %v1133 = vperm.slane %v34, 1
  %v1134 = vadd.f32 %v1131, %v1133
  %v1135 = vadd.f32 %v1132, %v1133
  %v1136 = vperm.slane %v33, 1
  %v1137 = vmul.f32 %v1136, %v1134
  %v1138 = vmul.f32 %v1136, %v1135
  %v1139 = vperm.slane %v33, 2
  %v1140 = vadd.f32 %v1137, %v1139
  %v1141 = vadd.f32 %v1138, %v1139
  %v1142 = vmul.f32 %v1140, 1.442695
  %v1143 = vpow.pop %v1142
  %v1144 = vmul.f32 %v1141, 1.442695
  %v1145 = vpow.pop %v1144
  %v1146 = vperm.slane %v33, 3
  %v1147 = vmul.f32 %v1146, %v19
  %v1148 = vmul.f32 %v1146, %v20
  %v1149 = vperm.slane %v33, 4
  %v1150 = vadd.f32 %v1147, %v1149
  %v1151 = vadd.f32 %v1148, %v1149
  %v1152 = vmul.f32 %v1150, 1.442695
  %v1153 = vpow.pop %v1152
  %v1154 = vmul.f32 %v1151, 1.442695
  %v1155 = vpow.pop %v1154
  %v1156 = vperm.slane %v33, 5
  %v1157 = vmul.f32 %v1156, %v1134
  %v1158 = vmul.f32 %v1156, %v1135
  %v1159 = vperm.slane %v33, 6
  %v1160 = vadd.f32 %v1157, %v1159
  %v1161 = vadd.f32 %v1158, %v1159
  %v1162 = vmul.f32 %v1160, 1.442695
  %v1163 = vpow.pop %v1162
  %v1164 = vmul.f32 %v1161, 1.442695
  %v1165 = vpow.pop %v1164
  %1168 = vrot.lane.b32.xlu0 %v19, 32
  %v1169 = vpop.permute.xlu0 %1168
  %1170 = vrot.lane.b32.xlu0 %v20, 32
  %v1171 = vpop.permute.xlu0 %1170
  %v1174 = vsel %vm184, %v1134, %v1169
  %v1175 = vsel %vm184, %v1135, %v1171
  %v1176 = vperm.slane %v33, 7
  %v1178 = vsel %vm187, %v1174, 0
  %v1181 = vsel %vm187, %v1175, 0
  %1183 = vmatpush.msra.mxu0 0.0
  %1184 = vmatpush.msra.mxu0 0.0
  %1185 = vmatpush.msra.mxu0 0.0
  %1186 = vmatpush.msra.mxu0 0.0
  %1187 = vmatpush.msra.mxu0 0.0
  %1188 = vmatpush.msra.mxu0 0.0
  %1189 = vmatpush.msra.mxu0 0.0
  %1190 = vmatpush.msra.mxu0 0.0
  %1191 = vmatpush.msra.mxu0 %v32
  %1192 = vmatpush.msra.mxu0 %v31
  %1193 = vmatpush.msra.mxu0 %v30
  %1194 = vmatpush.msra.mxu0 %v29
  %1195 = vmatpush.msra.mxu0 %v28
  %1196 = vmatpush.msra.mxu0 %v27
  %1197 = vmatpush.msra.mxu0 %v26
  %1198 = vmatpush.msra.mxu0 %v25
  %1199 = vmatmul.f32.gmra.mxu0 %v1178
  %v1200 = vpop.f32.mrf.mxu0
  %v1201 = vadd.f32 %v1176, %v1200
  %1202 = vmatmul.f32.gmra.mxu0 %v1181
  %v1203 = vpop.f32.mrf.mxu0
  %v1204 = vadd.f32 %v1176, %v1203
  %1205 = vdwg.mxu0
  %v1206 = vtanh.pop %v1201
  %v1207 = vtanh.pop %v1204
  %v1208 = vmul.f32 %v1153, %v19
  %v1209 = vmul.f32 %v1155, %v20
  %v1210 = vmul.f32 %v1143, %v1206
  %v1211 = vmul.f32 %v1145, %v1207
  %v1212 = vadd.f32 %v1208, %v1210
  %v1213 = vadd.f32 %v1209, %v1211
  %v1214 = vtanh.pop %v1212
  %v1215 = vtanh.pop %v1213
  %v1216 = vmul.f32 %v1163, %v1214
  %v1217 = vmul.f32 %v1165, %v1215
  %v1218 = vadd.f32 %v1216, %v17
  %v1219 = vadd.f32 %v1217, %v18
  %v1220 = vsel %vm184, %v1218, 0.0
  %1221 = vadd.xlane.f32.xlu0 %v1220
  %v1222 = vpop.xlane.xlu0 %1221
  %v1223 = vsel %vm184, %v1219, 0.0
  %1224 = vadd.xlane.f32.xlu0 %v1223
  %v1225 = vpop.xlane.xlu0 %1224
  %v1226 = vmul.f32 %v1222, %v1091
  %v1227 = vmul.f32 %v1225, %v1091
  %v1228 = vsub.f32 %v1218, %v1226
  %v1229 = vsub.f32 %v1219, %v1227
  %v1230 = vmul.f32 %v1228, %v1228
  %v1231 = vmul.f32 %v1229, %v1229
  %v1232 = vsel %vm184, %v1230, 0.0
  %1233 = vadd.xlane.f32.xlu0 %v1232
  %v1234 = vpop.xlane.xlu0 %1233
  %v1235 = vsel %vm184, %v1231, 0.0
  %1236 = vadd.xlane.f32.xlu0 %v1235
  %v1237 = vpop.xlane.xlu0 %1236
  %v1238 = vmul.f32 %v1234, %v1091
  %v1239 = vmul.f32 %v1237, %v1091
  %v1240 = vadd.f32 %v1238, 1e-05
  %v1241 = vadd.f32 %v1239, 1e-05
  %v1242 = vrsqrt.pop %v1240
  %v1243 = vmul.f32 %v1242, %v1240
  %v1244 = vmul.f32 %v1243, %v1242
  %v1245 = vmul.f32 0.5, %v1244
  %v1246 = vsub.f32 1.5, %v1245
  %v1247 = vmul.f32 %v1242, %v1246
  %vm1248 = vweird.f32 %v1240
  %vm1249 = vweird.f32 %v1242
  %vm1250 = vmor %vm1248, %vm1249
  %v1251 = vsel %vm1250, %v1242, %v1247
  %v1252 = vrsqrt.pop %v1241
  %v1253 = vmul.f32 %v1252, %v1241
  %v1254 = vmul.f32 %v1253, %v1252
  %v1255 = vmul.f32 0.5, %v1254
  %v1256 = vsub.f32 1.5, %v1255
  %v1257 = vmul.f32 %v1252, %v1256
  %vm1258 = vweird.f32 %v1241
  %vm1259 = vweird.f32 %v1252
  %vm1260 = vmor %vm1258, %vm1259
  %v1261 = vsel %vm1260, %v1252, %v1257
  %v1262 = vmul.f32 %v1228, %v1251
  %v1263 = vmul.f32 %v1229, %v1261
  %v1264 = vperm.slane %v34, 2
  %v1265 = vmul.f32 %v1262, %v1264
  %v1266 = vmul.f32 %v1263, %v1264
  %v1267 = vperm.slane %v34, 3
  %v1268 = vadd.f32 %v1265, %v1267
  %v1269 = vadd.f32 %v1266, %v1267
  %1272 = vrot.lane.b32.xlu0 %v1212, 32
  %v1273 = vpop.permute.xlu0 %1272
  %1274 = vrot.lane.b32.xlu0 %v1213, 32
  %v1275 = vpop.permute.xlu0 %1274
  %v1278 = vsel %vm184, %v1268, %v1273
  %v1279 = vsel %vm184, %v1269, %v1275
  %1280 = vst.msk [vmem:[%s4] sm:$0xff] %vm187, %v1278
  %1281 = vst.msk [vmem:[%s4 + $0x8] sm:$0xff] %vm187, %v1279
  // Predicated region
  $region18: #{mlstm_layer_forward.1} parent=0 // pred_check
    _
  $region19: #{mlstm_layer_forward.1} parent=0 // pred_check_branch
    %1283 = sbr.rel (0) target = $region21
  $region20: #{mlstm_layer_forward.1} parent=0 // pred_region
    _
  $region21: #{mlstm_layer_forward.1} parent=0 // pred_fallthru
    _
  // Predicated region
  $region22: #{mlstm_layer_forward.1} parent=0 // pred_check
    _
  $region23: #{mlstm_layer_forward.1} parent=0 // pred_check_branch
    %1285 = sbr.rel (0) target = $region25
  $region24: #{mlstm_layer_forward.1} parent=0 // pred_region
    _
  $region25: #{mlstm_layer_forward.1} parent=0 // pred_fallthru
    _

</llo_original>
